<compile_context>
chip_gen: v5e
topology: v5e:2x2
jax: 0.10.0
libtpu: 0.0.40
codegen_flags: <defaults>
</compile_context>

<pallas_src>
import functools
import math

import jax
import jax.numpy as jnp
from jax.experimental import pallas as pl
from jax.experimental.pallas import tpu as pltpu

LN_EPS = 1e-5       # nn.LayerNorm default eps
NORM_EPS = 1e-5     # series-stationarization eps (torch.sqrt(var + 1e-5))
MM_DTYPE = jnp.bfloat16   # matmul-operand dtype (set to jnp.float32 for exact f32)
VMEM_LIMIT = 32 * 1024 * 1024


# ------------------------------------------------------------------
# In-kernel helpers (pure value functions on VMEM-resident tiles)
# ------------------------------------------------------------------

def _mm(a, b):
    """2-D matmul: bf16 operands, f32 accumulation."""
    return jnp.dot(a.astype(MM_DTYPE), b.astype(MM_DTYPE),
                   preferred_element_type=jnp.float32)


def _mm_nt(a, b):
    """a @ b.T (contract last dims): bf16 operands, f32 accumulation."""
    return jax.lax.dot_general(a.astype(MM_DTYPE), b.astype(MM_DTYPE),
                               (((1,), (1,)), ((), ())),
                               preferred_element_type=jnp.float32)


def _layernorm(x, g, b, eps=LN_EPS):
    mu = jnp.mean(x, axis=-1, keepdims=True)
    xc = x - mu
    var = jnp.mean(xc * xc, axis=-1, keepdims=True)
    return xc * jax.lax.rsqrt(var + eps) * g + b


def _softmax_rows(s):
    m = jnp.max(s, axis=-1, keepdims=True)
    e = jnp.exp(s - m)
    return e / jnp.sum(e, axis=-1, keepdims=True)


def _attention(x2, w_qkv, b_qkv, w_o, b_o, *, n_heads, batch, tokens, q_rows=None):
    """Fused-QKV multi-head self-attention.

    x2: [batch*tokens, d_in] with sample slabs stacked along rows.
    The softmax scale is pre-folded into W_q / b_q at init.  If q_rows is
    given, only the first q_rows tokens of each sample produce queries /
    outputs (keys/values still span all tokens).
    Per-head slices are at TRUE head width e (no lane padding); per-head
    outputs are concatenated and projected with ONE matmul over all rows.
    """
    d = w_o.shape[0]                      # n_heads * head_dim (true width)
    e = d // n_heads
    out_rows = tokens if q_rows is None else q_rows

    qkv = _mm(x2, w_qkv) + b_qkv          # [batch*tokens, 3d], f32
    outs = []
    for b in range(batch):                # attention stays per-sample (tiny T)
        slab = qkv[b * tokens:(b + 1) * tokens, :]
        heads = []
        for h in range(n_heads):
            q = slab[:out_rows, h * e:(h + 1) * e]
            k = slab[:, d + h * e:d + (h + 1) * e]
            v = slab[:, 2 * d + h * e:2 * d + (h + 1) * e]
            p = _softmax_rows(_mm_nt(q, k))               # [out_rows, tokens]
            heads.append(_mm(p, v))                       # [out_rows, e]
        outs.append(jnp.concatenate(heads, axis=-1))      # [out_rows, d]
    o = jnp.concatenate(outs, axis=0)                     # [batch*out_rows, d]
    return _mm(o, w_o) + b_o


# ------------------------------------------------------------------
# Fused encode kernel: series-norm + inverted embedding + encoder stack
# (one grid step per path; the full batch is processed inside the step)
# ------------------------------------------------------------------

def _encode_kernel(*refs, e_layers, n_heads, n_vars, batch, tokens):
    it = iter(refs)
    x_ref = next(it)                        # [1, B, T, L]
    w_emb_ref, b_emb_ref = next(it), next(it)
    layer_refs = [tuple(next(it) for _ in range(12)) for _ in range(e_layers)]
    g_enc_ref, be_enc_ref = next(it), next(it)
    enc_ref, stats_ref = next(it), next(it)

    x = x_ref[0]                                           # [B, T, L] f32
    # Series stationarization: per-variate-token stats over time (lane axis);
    # only the first n_vars token rows (real variates) are normalized.
    mean = jnp.mean(x, axis=-1, keepdims=True)             # [B, T, 1]
    xc = x - mean
    var = jnp.mean(xc * xc, axis=-1, keepdims=True)        # unbiased=False
    std = jnp.sqrt(var + NORM_EPS)
    tok = jax.lax.broadcasted_iota(jnp.int32, x.shape, 1)
    xn = jnp.where(tok < n_vars, xc / std, x)              # [B, T, L]

    # Lane-dense packed stats output: [B, 2, N]  (row 0 = mean, row 1 = std)
    m_l = mean[:, :n_vars, 0]                              # [B, N]
    s_l = std[:, :n_vars, 0]                               # [B, N]
    stats_ref[0] = jnp.concatenate(
        [m_l[:, None, :], s_l[:, None, :]], axis=1).astype(stats_ref.dtype)

    # Stack sample slabs -> all dense matmuls run over B*T rows at once.
    x2 = jnp.concatenate([xn[b] for b in range(batch)], axis=0)   # [B*T, L]

    # DataEmbedding_inverted: one Linear(seq_len -> d_model) over all tokens.
    h = _mm(x2, w_emb_ref[0]) + b_emb_ref[0]                      # [B*T, D]

    for (w_qkv, b_qkv, w_o, b_o, g1, be1,
         w_c1, b_c1, w_c2, b_c2, g2, be2) in layer_refs:
        a = _attention(h, w_qkv[0], b_qkv[0], w_o[0], b_o[0],
                       n_heads=n_heads, batch=batch, tokens=tokens)
        h = _layernorm(h + a, g1[0], be1[0])
        # conv1d(kernel=1) == pointwise Linear over d_model
        y = jnp.maximum(_mm(h, w_c1[0]) + b_c1[0], 0.0)
        y = _mm(y, w_c2[0]) + b_c2[0]
        h = _layernorm(h + y, g2[0], be2[0])

    h = _layernorm(h, g_enc_ref[0], be_enc_ref[0])
    for b in range(batch):
        enc_ref[0, b] = h[b * tokens:(b + 1) * tokens, :].astype(enc_ref.dtype)


def encode_paths(xcat, sp, hp):
    """xcat: [P, B, T, L] stacked tokens-first inputs; sp: path-stacked params."""
    P, B, T, L = xcat.shape
    D = hp["d_model"]
    N = hp["n_vars"]

    inputs = [xcat, sp["W_emb"], sp["b_emb"]]
    for lp in sp["enc_layers"]:
        inputs += [lp["W_qkv"], lp["b_qkv"], lp["Wo"], lp["bo"],
                   lp["g1"], lp["beta1"], lp["Wc1"], lp["bc1"],
                   lp["Wc2"], lp["bc2"], lp["g2"], lp["beta2"]]
    inputs += [sp["g_enc"], sp["beta_enc"]]

    def spec(a):
        nd = a.ndim
        return pl.BlockSpec((1,) + a.shape[1:], lambda p: (p,) + (0,) * (nd - 1))

    in_specs = [spec(a) for a in inputs]
    out_shape = (jax.ShapeDtypeStruct((P, B, T, D), jnp.float32),
                 jax.ShapeDtypeStruct((P, B, 2, N), jnp.float32))
    out_specs = (pl.BlockSpec((1, B, T, D), lambda p: (p, 0, 0, 0)),
                 pl.BlockSpec((1, B, 2, N), lambda p: (p, 0, 0, 0)))

    kernel = functools.partial(_encode_kernel, e_layers=hp["e_layers"],
                               n_heads=hp["n_heads"], n_vars=N,
                               batch=B, tokens=T)
    enc, stats = pl.pallas_call(
        kernel,
        out_shape=out_shape,
        grid=(P,),
        in_specs=in_specs,
        out_specs=out_specs,
        compiler_params=pltpu.CompilerParams(
            dimension_semantics=("parallel",),
            vmem_limit_bytes=VMEM_LIMIT),
    )(*inputs)
    return enc, stats


# ------------------------------------------------------------------
# Fused decode kernel: dynamic projector + de-normalization
# (one grid step per path; shared concat_enc stays VMEM-resident)
# ------------------------------------------------------------------

def _decode_kernel(x_ref, stats_ref, w_in, b_in, w_qkv, b_qkv, w_o, b_o,
                   w_mid, b_mid, w_out, b_out, dec_ref,
                   *, n_heads, n_vars, batch, tokens):
    x = x_ref[...]                                              # [B, T_tot, D]
    x2 = jnp.concatenate([x[b] for b in range(batch)], axis=0)  # [B*T_tot, D]
    h = _mm(x2, w_in[0]) + b_in[0]                              # [B*T_tot, hid]

    # Only rows :N reach the PyTorch output slice [:, :, :N] -> restrict
    # queries and everything after attention to those rows (k/v span all).
    h = _attention(h, w_qkv[0], b_qkv[0], w_o[0], b_o[0],
                   n_heads=n_heads, batch=batch, tokens=tokens, q_rows=n_vars)
    h = jnp.maximum(_mm(h, w_mid[0]) + b_mid[0], 0.0)           # [B*N, hid]
    out = _mm(h, w_out[0]) + b_out[0]                           # [B*N, S]

    stats = stats_ref[0]                                        # [B, 2, N]
    for b in range(batch):
        m_col = jnp.transpose(stats[b, 0:1, :], (1, 0))         # [N, 1]
        s_col = jnp.transpose(stats[b, 1:2, :], (1, 0))         # [N, 1]
        blk = out[b * n_vars:(b + 1) * n_vars, :]                # [N, S]
        dec_ref[0, b] = (blk * s_col + m_col).astype(dec_ref.dtype)


def decode_paths(concat_enc, stats, sp_proj, hp):
    B, T_tot, D = concat_enc.shape
    P = stats.shape[0]
    N = hp["n_vars"]
    S = hp["seq_len"]

    inputs = [concat_enc, stats,
              sp_proj["W_in"], sp_proj["b_in"], sp_proj["W_qkv"], sp_proj["b_qkv"],
              sp_proj["Wo"], sp_proj["bo"], sp_proj["W_mid"], sp_proj["b_mid"],
              sp_proj["W_out"], sp_proj["b_out"]]

    def path_spec(a):
        nd = a.ndim
        return pl.BlockSpec((1,) + a.shape[1:], lambda p: (p,) + (0,) * (nd - 1))

    # concat_enc is shared by all paths: constant index_map -> no re-fetch.
    in_specs = [pl.BlockSpec((B, T_tot, D), lambda p: (0, 0, 0))]
    in_specs += [path_spec(a) for a in inputs[1:]]

    kernel = functools.partial(_decode_kernel, n_heads=hp["proj_heads"],
                               n_vars=N, batch=B, tokens=T_tot)
    dec = pl.pallas_call(
        kernel,
        out_shape=jax.ShapeDtypeStruct((P, B, N, S), jnp.float32),
        grid=(P,),
        in_specs=in_specs,
        out_specs=pl.BlockSpec((1, B, N, S), lambda p: (p, 0, 0, 0)),
        compiler_params=pltpu.CompilerParams(
            dimension_semantics=("parallel",),
            vmem_limit_bytes=VMEM_LIMIT),
    )(*inputs)
    return dec


# ------------------------------------------------------------------
# Top-level forward (mirrors SignalReconstructionModel.forward)
# ------------------------------------------------------------------

def signal_reconstruction_forward(x_enc_list, x_mark_enc_list, path_params, hp):
    P = len(path_params)
    # All paths share identical shapes here, so stack them along a leading
    # "path" grid axis -> the whole forward is exactly 2 pallas_calls.
    assert all(x.shape == x_enc_list[0].shape for x in x_enc_list)
    assert all(x.shape == x_mark_enc_list[0].shape for x in x_mark_enc_list)

    xcats = []
    for x_enc, x_mark in zip(x_enc_list, x_mark_enc_list):
        # tokens-first layout: contracted axis (time) last for the embedding
        xcats.append(jnp.concatenate(
            [jnp.transpose(x_enc, (0, 2, 1)), jnp.transpose(x_mark, (0, 2, 1))],
            axis=1).astype(jnp.float32))
    xcat = jnp.stack(xcats, axis=0)                                  # [P, B, T, L]

    stacked = jax.tree.map(lambda *a: jnp.stack(a, axis=0), *path_params)

    enc, stats = encode_paths(xcat, stacked, hp)      # [P,B,T,D], [P,B,2,N]

    # torch.cat(encoded_outputs, dim=1): concat paths along the token axis.
    # (d_model is identical across paths here, so the pad-to-max is a no-op.)
    concat = jnp.concatenate([enc[p] for p in range(P)], axis=1)     # [B, P*T, D]

    dec = decode_paths(concat, stats, stacked["projector"], hp)      # [P,B,N,S]
    return [jnp.transpose(dec[p], (0, 2, 1)) for p in range(P)]      # [B, S, N] each


# ------------------------------------------------------------------
# Deterministic, kernel-ready parameter initialization.
# Weights are stored pre-transposed [K, O] in bf16, QKV fused at TRUE head
# width, and the 1/sqrt(E) softmax scale folded into W_q / b_q.
# ------------------------------------------------------------------

def _init_linear(key, in_dim, out_dim, w_dtype, w_scale=0.05, b_scale=0.01):
    kw, kb = jax.random.split(key)
    w = (jax.random.normal(kw, (in_dim, out_dim), jnp.float32) * w_scale).astype(w_dtype)
    b = jax.random.normal(kb, (1, out_dim), jnp.float32) * b_scale
    return w, b


def _init_mha(key, dim, n_heads):
    e = dim // n_heads
    scale = 1.0 / math.sqrt(e)
    kq, kk, kv, ko = jax.random.split(key, 4)
    wq, bq = _init_linear(kq, dim, dim, jnp.float32)
    wk, bk = _init_linear(kk, dim, dim, jnp.float32)
    wv, bv = _init_linear(kv, dim, dim, jnp.float32)
    wo, bo = _init_linear(ko, dim, dim, MM_DTYPE)
    w_qkv = jnp.concatenate([wq * scale, wk, wv], axis=1).astype(MM_DTYPE)  # [dim, 3*dim]
    b_qkv = jnp.concatenate([bq * scale, bk, bv], axis=1)                   # [1, 3*dim] f32
    return w_qkv, b_qkv, wo, bo


def init_path_params(key, *, seq_len, d_model, n_heads, d_ff, e_layers, proj_heads):
    keys = iter(jax.random.split(key, 8 + 4 * e_layers))
    p = {}
    p["W_emb"], p["b_emb"] = _init_linear(next(keys), seq_len, d_model, MM_DTYPE)

    layers = []
    for _ in range(e_layers):
        lp = {}
        lp["W_qkv"], lp["b_qkv"], lp["Wo"], lp["bo"] = _init_mha(next(keys), d_model, n_heads)
        lp["Wc1"], lp["bc1"] = _init_linear(next(keys), d_model, d_ff, MM_DTYPE)
        lp["Wc2"], lp["bc2"] = _init_linear(next(keys), d_ff, d_model, MM_DTYPE)
        lp["g1"] = jnp.ones((1, d_model), jnp.float32)
        lp["beta1"] = jnp.zeros((1, d_model), jnp.float32)
        lp["g2"] = jnp.ones((1, d_model), jnp.float32)
        lp["beta2"] = jnp.zeros((1, d_model), jnp.float32)
        layers.append(lp)
    p["enc_layers"] = layers
    p["g_enc"] = jnp.ones((1, d_model), jnp.float32)
    p["beta_enc"] = jnp.zeros((1, d_model), jnp.float32)

    # EnhancedDynamicProjectorWithAttention(input_dim=d_model, output_dim=seq_len,
    #   hidden_dim=d_model//4, num_layers=2, num_heads=8)
    hid = d_model // 4
    proj = {}
    proj["W_in"], proj["b_in"] = _init_linear(next(keys), d_model, hid, MM_DTYPE)
    proj["W_qkv"], proj["b_qkv"], proj["Wo"], proj["bo"] = _init_mha(next(keys), hid, proj_heads)
    proj["W_mid"], proj["b_mid"] = _init_linear(next(keys), hid, hid, MM_DTYPE)
    proj["W_out"], proj["b_out"] = _init_linear(next(keys), hid, seq_len, MM_DTYPE)
    p["projector"] = proj
    return p


# ------------------------------------------------------------------
# Driver
# ------------------------------------------------------------------

if __name__ == "__main__":
    NUM_PATHS = 2
    B = 2            # batch
    SEQ_LEN = 16     # configs.seq_len
    N_VARS = 4       # variates per path
    N_MARK = 3       # time-mark channels
    D_MODEL = 32     # configs.d_model (identical across paths -> max == d_model)
    N_HEADS = 4      # configs.n_heads
    D_FF = 64        # configs.d_ff
    E_LAYERS = 1     # configs.e_layers
    PROJ_HEADS = 8   # projector num_heads default (hidden_dim = d_model // 4 = 8)

    hparams = dict(d_model=D_MODEL, n_heads=N_HEADS, e_layers=E_LAYERS,
                   proj_heads=PROJ_HEADS, seq_len=SEQ_LEN, n_vars=N_VARS)

    pkey = jax.random.PRNGKey(42)
    path_params = [
        init_path_params(k, seq_len=SEQ_LEN, d_model=D_MODEL, n_heads=N_HEADS,
                         d_ff=D_FF, e_layers=E_LAYERS, proj_heads=PROJ_HEADS)
        for k in jax.random.split(pkey, NUM_PATHS)
    ]

    dkey = jax.random.PRNGKey(0)
    dkeys = jax.random.split(dkey, 2 * NUM_PATHS)
    x_enc_list = [jax.random.normal(dkeys[2 * i], (B, SEQ_LEN, N_VARS), jnp.float32)
                  for i in range(NUM_PATHS)]
    x_mark_list = [jax.random.normal(dkeys[2 * i + 1], (B, SEQ_LEN, N_MARK), jnp.float32)
                   for i in range(NUM_PATHS)]

    res = signal_reconstruction_forward(x_enc_list, x_mark_list, path_params, hparams)
    for r in res:
        jax.block_until_ready(r)
        assert r.shape == (B, SEQ_LEN, N_VARS)
        assert bool(jnp.all(jnp.isfinite(r)))
    print("KERNEL_OK")
</pallas_src>

<mosaic_0001>
module attributes {stable_mosaic.version = 11 : i64} {
  func.func @_encode_kernel(%arg0: i32, %arg1: memref<1x2x7x16xf32, #tpu.memory_space<vmem>>, %arg2: memref<1x16x32xbf16, #tpu.memory_space<vmem>>, %arg3: memref<1x1x32xf32, #tpu.memory_space<vmem>>, %arg4: memref<1x32x96xbf16, #tpu.memory_space<vmem>>, %arg5: memref<1x1x96xf32, #tpu.memory_space<vmem>>, %arg6: memref<1x32x32xbf16, #tpu.memory_space<vmem>>, %arg7: memref<1x1x32xf32, #tpu.memory_space<vmem>>, %arg8: memref<1x1x32xf32, #tpu.memory_space<vmem>>, %arg9: memref<1x1x32xf32, #tpu.memory_space<vmem>>, %arg10: memref<1x32x64xbf16, #tpu.memory_space<vmem>>, %arg11: memref<1x1x64xf32, #tpu.memory_space<vmem>>, %arg12: memref<1x64x32xbf16, #tpu.memory_space<vmem>>, %arg13: memref<1x1x32xf32, #tpu.memory_space<vmem>>, %arg14: memref<1x1x32xf32, #tpu.memory_space<vmem>>, %arg15: memref<1x1x32xf32, #tpu.memory_space<vmem>>, %arg16: memref<1x1x32xf32, #tpu.memory_space<vmem>>, %arg17: memref<1x1x32xf32, #tpu.memory_space<vmem>>, %arg18: memref<1x2x7x32xf32, #tpu.memory_space<vmem>>, %arg19: memref<1x2x2x4xf32, #tpu.memory_space<vmem>>) attributes {dimension_semantics = [#tpu.dimension_semantics<parallel>], iteration_bounds = array<i64: 2>, scalar_prefetch = 0 : i64, scratch_operands = 0 : i64, tpu.core_type = #tpu.core_type<tc>, window_params = [{transform_indices = @transform_0, window_bounds = array<i64: 1, 2, 7, 16>}, {transform_indices = @transform_1, window_bounds = array<i64: 1, 16, 32>}, {transform_indices = @transform_2, window_bounds = array<i64: 1, 1, 32>}, {transform_indices = @transform_3, window_bounds = array<i64: 1, 32, 96>}, {transform_indices = @transform_4, window_bounds = array<i64: 1, 1, 96>}, {transform_indices = @transform_5, window_bounds = array<i64: 1, 32, 32>}, {transform_indices = @transform_6, window_bounds = array<i64: 1, 1, 32>}, {transform_indices = @transform_7, window_bounds = array<i64: 1, 1, 32>}, {transform_indices = @transform_8, window_bounds = array<i64: 1, 1, 32>}, {transform_indices = @transform_9, window_bounds = array<i64: 1, 32, 64>}, {transform_indices = @transform_10, window_bounds = array<i64: 1, 1, 64>}, {transform_indices = @transform_11, window_bounds = array<i64: 1, 64, 32>}, {transform_indices = @transform_12, window_bounds = array<i64: 1, 1, 32>}, {transform_indices = @transform_13, window_bounds = array<i64: 1, 1, 32>}, {transform_indices = @transform_14, window_bounds = array<i64: 1, 1, 32>}, {transform_indices = @transform_15, window_bounds = array<i64: 1, 1, 32>}, {transform_indices = @transform_16, window_bounds = array<i64: 1, 1, 32>}, {transform_indices = @transform_17, window_bounds = array<i64: 1, 2, 7, 32>}, {transform_indices = @transform_18, window_bounds = array<i64: 1, 2, 2, 4>}]} {
    %c0 = arith.constant 0 : index
    %c0_0 = arith.constant 0 : index
    %c0_1 = arith.constant 0 : index
    %c0_2 = arith.constant 0 : index
    %0 = vector.load %arg1[%c0, %c0_0, %c0_1, %c0_2] : memref<1x2x7x16xf32, #tpu.memory_space<vmem>>, vector<1x2x7x16xf32>
    %1 = vector.shape_cast %0 : vector<1x2x7x16xf32> to vector<2x7x16xf32>
    %cst = arith.constant dense<0.000000e+00> : vector<2x7xf32>
    %2 = vector.multi_reduction <add>, %1, %cst [2] : vector<2x7x16xf32> to vector<2x7xf32>
    %3 = vector.shape_cast %2 : vector<2x7xf32> to vector<2x7x1xf32>
    %cst_3 = arith.constant 1.600000e+01 : f32
    %4 = vector.broadcast %cst_3 : f32 to vector<2x7x1xf32>
    %5 = arith.divf %3, %4 : vector<2x7x1xf32>
    %6 = vector.broadcast %5 : vector<2x7x1xf32> to vector<2x7x16xf32>
    %7 = arith.subf %1, %6 : vector<2x7x16xf32>
    %8 = arith.mulf %7, %7 : vector<2x7x16xf32>
    %cst_4 = arith.constant dense<0.000000e+00> : vector<2x7xf32>
    %9 = vector.multi_reduction <add>, %8, %cst_4 [2] : vector<2x7x16xf32> to vector<2x7xf32>
    %10 = vector.shape_cast %9 : vector<2x7xf32> to vector<2x7x1xf32>
    %cst_5 = arith.constant 1.600000e+01 : f32
    %11 = vector.broadcast %cst_5 : f32 to vector<2x7x1xf32>
    %12 = arith.divf %10, %11 : vector<2x7x1xf32>
    %cst_6 = arith.constant 9.99999974E-6 : f32
    %13 = vector.broadcast %cst_6 : f32 to vector<2x7x1xf32>
    %14 = arith.addf %12, %13 : vector<2x7x1xf32>
    %15 = math.sqrt %14 : vector<2x7x1xf32>
    %16 = tpu.iota {dimensions = array<i32: 1>} : vector<2x7x16xi32>
    %c4_i32 = arith.constant 4 : i32
    %17 = vector.broadcast %c4_i32 : i32 to vector<2x7x16xi32>
    %18 = arith.cmpi slt, %16, %17 : vector<2x7x16xi32>
    %19 = vector.broadcast %15 : vector<2x7x1xf32> to vector<2x7x16xf32>
    %20 = arith.divf %7, %19 : vector<2x7x16xf32>
    %21 = arith.select %18, %20, %1 : vector<2x7x16xi1>, vector<2x7x16xf32>
    %22 = vector.extract_strided_slice %5 {offsets = [0, 0, 0], sizes = [2, 4, 1], strides = [1, 1, 1]} : vector<2x7x1xf32> to vector<2x4x1xf32>
    %23 = vector.shape_cast %22 : vector<2x4x1xf32> to vector<2x4xf32>
    %24 = vector.extract_strided_slice %15 {offsets = [0, 0, 0], sizes = [2, 4, 1], strides = [1, 1, 1]} : vector<2x7x1xf32> to vector<2x4x1xf32>
    %25 = vector.shape_cast %24 : vector<2x4x1xf32> to vector<2x4xf32>
    %26 = vector.shape_cast %23 : vector<2x4xf32> to vector<2x1x4xf32>
    %27 = vector.shape_cast %25 : vector<2x4xf32> to vector<2x1x4xf32>
    %28 = tpu.concatenate %26, %27 in 1 : vector<2x1x4xf32>, vector<2x1x4xf32> -> vector<2x2x4xf32>
    %c0_7 = arith.constant 0 : index
    %c0_8 = arith.constant 0 : index
    %c0_9 = arith.constant 0 : index
    %c0_10 = arith.constant 0 : index
    %29 = vector.load %arg19[%c0_7, %c0_8, %c0_9, %c0_10] : memref<1x2x2x4xf32, #tpu.memory_space<vmem>>, vector<1x2x2x4xf32>
    %30 = vector.shape_cast %29 : vector<1x2x2x4xf32> to vector<2x2x4xf32>
    %31 = vector.shape_cast %28 : vector<2x2x4xf32> to vector<1x2x2x4xf32>
    tpu.vector_store %arg19[%c0_7, %c0_8, %c0_9, %c0_10], %31 {strides = array<i32>} : memref<1x2x2x4xf32, #tpu.memory_space<vmem>>, vector<1x2x2x4xf32>,
    %32 = vector.extract_strided_slice %21 {offsets = [0, 0, 0], sizes = [1, 7, 16], strides = [1, 1, 1]} : vector<2x7x16xf32> to vector<1x7x16xf32>
    %33 = vector.shape_cast %32 : vector<1x7x16xf32> to vector<7x16xf32>
    %34 = vector.extract_strided_slice %21 {offsets = [1, 0, 0], sizes = [1, 7, 16], strides = [1, 1, 1]} : vector<2x7x16xf32> to vector<1x7x16xf32>
    %35 = vector.shape_cast %34 : vector<1x7x16xf32> to vector<7x16xf32>
    %36 = tpu.concatenate %33, %35 in 0 : vector<7x16xf32>, vector<7x16xf32> -> vector<14x16xf32>
    %c0_11 = arith.constant 0 : index
    %c0_12 = arith.constant 0 : index
    %c0_13 = arith.constant 0 : index
    %37 = vector.load %arg2[%c0_11, %c0_12, %c0_13] : memref<1x16x32xbf16, #tpu.memory_space<vmem>>, vector<1x16x32xbf16>
    %38 = vector.shape_cast %37 : vector<1x16x32xbf16> to vector<16x32xbf16>
    %39 = arith.truncf %36 : vector<14x16xf32> to vector<14x16xbf16>
    %cst_14 = arith.constant dense<0.000000e+00> : vector<14x32xf32>
    %40 = tpu.matmul %39, %38, %cst_14 {dimension_numbers = #tpu.dot_dimension_numbers<[1], [0], [0], [1], [0, 0, 1, 1], [], []>} : vector<14x16xbf16>, vector<16x32xbf16>, vector<14x32xf32> -> vector<14x32xf32>
    %c0_15 = arith.constant 0 : index
    %c0_16 = arith.constant 0 : index
    %c0_17 = arith.constant 0 : index
    %41 = vector.load %arg3[%c0_15, %c0_16, %c0_17] : memref<1x1x32xf32, #tpu.memory_space<vmem>>, vector<1x1x32xf32>
    %42 = vector.shape_cast %41 : vector<1x1x32xf32> to vector<1x32xf32>
    %43 = vector.broadcast %42 : vector<1x32xf32> to vector<14x32xf32>
    %44 = arith.addf %40, %43 : vector<14x32xf32>
    %c0_18 = arith.constant 0 : index
    %c0_19 = arith.constant 0 : index
    %c0_20 = arith.constant 0 : index
    %45 = vector.load %arg4[%c0_18, %c0_19, %c0_20] : memref<1x32x96xbf16, #tpu.memory_space<vmem>>, vector<1x32x96xbf16>
    %46 = vector.shape_cast %45 : vector<1x32x96xbf16> to vector<32x96xbf16>
    %c0_21 = arith.constant 0 : index
    %c0_22 = arith.constant 0 : index
    %c0_23 = arith.constant 0 : index
    %47 = vector.load %arg5[%c0_21, %c0_22, %c0_23] : memref<1x1x96xf32, #tpu.memory_space<vmem>>, vector<1x1x96xf32>
    %48 = vector.shape_cast %47 : vector<1x1x96xf32> to vector<1x96xf32>
    %c0_24 = arith.constant 0 : index
    %c0_25 = arith.constant 0 : index
    %c0_26 = arith.constant 0 : index
    %49 = vector.load %arg6[%c0_24, %c0_25, %c0_26] : memref<1x32x32xbf16, #tpu.memory_space<vmem>>, vector<1x32x32xbf16>
    %50 = vector.shape_cast %49 : vector<1x32x32xbf16> to vector<32x32xbf16>
    %c0_27 = arith.constant 0 : index
    %c0_28 = arith.constant 0 : index
    %c0_29 = arith.constant 0 : index
    %51 = vector.load %arg7[%c0_27, %c0_28, %c0_29] : memref<1x1x32xf32, #tpu.memory_space<vmem>>, vector<1x1x32xf32>
    %52 = vector.shape_cast %51 : vector<1x1x32xf32> to vector<1x32xf32>
    %53 = arith.truncf %44 : vector<14x32xf32> to vector<14x32xbf16>
    %cst_30 = arith.constant dense<0.000000e+00> : vector<14x96xf32>
    %54 = tpu.matmul %53, %46, %cst_30 {dimension_numbers = #tpu.dot_dimension_numbers<[1], [0], [0], [1], [0, 0, 1, 1], [], []>} : vector<14x32xbf16>, vector<32x96xbf16>, vector<14x96xf32> -> vector<14x96xf32>
    %55 = vector.broadcast %48 : vector<1x96xf32> to vector<14x96xf32>
    %56 = arith.addf %54, %55 : vector<14x96xf32>
    %57 = vector.extract_strided_slice %56 {offsets = [0, 0], sizes = [7, 96], strides = [1, 1]} : vector<14x96xf32> to vector<7x96xf32>
    %58 = vector.extract_strided_slice %57 {offsets = [0, 0], sizes = [7, 8], strides = [1, 1]} : vector<7x96xf32> to vector<7x8xf32>
    %59 = vector.extract_strided_slice %57 {offsets = [0, 32], sizes = [7, 8], strides = [1, 1]} : vector<7x96xf32> to vector<7x8xf32>
    %60 = vector.extract_strided_slice %57 {offsets = [0, 64], sizes = [7, 8], strides = [1, 1]} : vector<7x96xf32> to vector<7x8xf32>
    %61 = arith.truncf %58 : vector<7x8xf32> to vector<7x8xbf16>
    %62 = arith.truncf %59 : vector<7x8xf32> to vector<7x8xbf16>
    %cst_31 = arith.constant dense<0.000000e+00> : vector<7x7xf32>
    %63 = tpu.matmul %61, %62, %cst_31 {dimension_numbers = #tpu.dot_dimension_numbers<[1], [1], [0], [0], [0, 0, 1, 0], [], []>} : vector<7x8xbf16>, vector<7x8xbf16>, vector<7x7xf32> -> vector<7x7xf32>
    %cst_32 = arith.constant dense<0xFF800000> : vector<7xf32>
    %64 = vector.multi_reduction <maximumf>, %63, %cst_32 [1] : vector<7x7xf32> to vector<7xf32>
    %65 = vector.shape_cast %64 : vector<7xf32> to vector<7x1xf32>
    %66 = vector.broadcast %65 : vector<7x1xf32> to vector<7x7xf32>
    %67 = arith.subf %63, %66 : vector<7x7xf32>
    %68 = math.exp %67 : vector<7x7xf32>
    %cst_33 = arith.constant dense<0.000000e+00> : vector<7xf32>
    %69 = vector.multi_reduction <add>, %68, %cst_33 [1] : vector<7x7xf32> to vector<7xf32>
    %70 = vector.shape_cast %69 : vector<7xf32> to vector<7x1xf32>
    %71 = vector.broadcast %70 : vector<7x1xf32> to vector<7x7xf32>
    %72 = arith.divf %68, %71 : vector<7x7xf32>
    %73 = arith.truncf %72 : vector<7x7xf32> to vector<7x7xbf16>
    %74 = arith.truncf %60 : vector<7x8xf32> to vector<7x8xbf16>
    %cst_34 = arith.constant dense<0.000000e+00> : vector<7x8xf32>
    %75 = tpu.matmul %73, %74, %cst_34 {dimension_numbers = #tpu.dot_dimension_numbers<[1], [0], [0], [1], [0, 0, 1, 1], [], []>} : vector<7x7xbf16>, vector<7x8xbf16>, vector<7x8xf32> -> vector<7x8xf32>
    %76 = vector.extract_strided_slice %57 {offsets = [0, 8], sizes = [7, 8], strides = [1, 1]} : vector<7x96xf32> to vector<7x8xf32>
    %77 = vector.extract_strided_slice %57 {offsets = [0, 40], sizes = [7, 8], strides = [1, 1]} : vector<7x96xf32> to vector<7x8xf32>
    %78 = vector.extract_strided_slice %57 {offsets = [0, 72], sizes = [7, 8], strides = [1, 1]} : vector<7x96xf32> to vector<7x8xf32>
    %79 = arith.truncf %76 : vector<7x8xf32> to vector<7x8xbf16>
    %80 = arith.truncf %77 : vector<7x8xf32> to vector<7x8xbf16>
    %cst_35 = arith.constant dense<0.000000e+00> : vector<7x7xf32>
    %81 = tpu.matmul %79, %80, %cst_35 {dimension_numbers = #tpu.dot_dimension_numbers<[1], [1], [0], [0], [0, 0, 1, 0], [], []>} : vector<7x8xbf16>, vector<7x8xbf16>, vector<7x7xf32> -> vector<7x7xf32>
    %cst_36 = arith.constant dense<0xFF800000> : vector<7xf32>
    %82 = vector.multi_reduction <maximumf>, %81, %cst_36 [1] : vector<7x7xf32> to vector<7xf32>
    %83 = vector.shape_cast %82 : vector<7xf32> to vector<7x1xf32>
    %84 = vector.broadcast %83 : vector<7x1xf32> to vector<7x7xf32>
    %85 = arith.subf %81, %84 : vector<7x7xf32>
    %86 = math.exp %85 : vector<7x7xf32>
    %cst_37 = arith.constant dense<0.000000e+00> : vector<7xf32>
    %87 = vector.multi_reduction <add>, %86, %cst_37 [1] : vector<7x7xf32> to vector<7xf32>
    %88 = vector.shape_cast %87 : vector<7xf32> to vector<7x1xf32>
    %89 = vector.broadcast %88 : vector<7x1xf32> to vector<7x7xf32>
    %90 = arith.divf %86, %89 : vector<7x7xf32>
    %91 = arith.truncf %90 : vector<7x7xf32> to vector<7x7xbf16>
    %92 = arith.truncf %78 : vector<7x8xf32> to vector<7x8xbf16>
    %cst_38 = arith.constant dense<0.000000e+00> : vector<7x8xf32>
    %93 = tpu.matmul %91, %92, %cst_38 {dimension_numbers = #tpu.dot_dimension_numbers<[1], [0], [0], [1], [0, 0, 1, 1], [], []>} : vector<7x7xbf16>, vector<7x8xbf16>, vector<7x8xf32> -> vector<7x8xf32>
    %94 = vector.extract_strided_slice %57 {offsets = [0, 16], sizes = [7, 8], strides = [1, 1]} : vector<7x96xf32> to vector<7x8xf32>
    %95 = vector.extract_strided_slice %57 {offsets = [0, 48], sizes = [7, 8], strides = [1, 1]} : vector<7x96xf32> to vector<7x8xf32>
    %96 = vector.extract_strided_slice %57 {offsets = [0, 80], sizes = [7, 8], strides = [1, 1]} : vector<7x96xf32> to vector<7x8xf32>
    %97 = arith.truncf %94 : vector<7x8xf32> to vector<7x8xbf16>
    %98 = arith.truncf %95 : vector<7x8xf32> to vector<7x8xbf16>
    %cst_39 = arith.constant dense<0.000000e+00> : vector<7x7xf32>
    %99 = tpu.matmul %97, %98, %cst_39 {dimension_numbers = #tpu.dot_dimension_numbers<[1], [1], [0], [0], [0, 0, 1, 0], [], []>} : vector<7x8xbf16>, vector<7x8xbf16>, vector<7x7xf32> -> vector<7x7xf32>
    %cst_40 = arith.constant dense<0xFF800000> : vector<7xf32>
    %100 = vector.multi_reduction <maximumf>, %99, %cst_40 [1] : vector<7x7xf32> to vector<7xf32>
    %101 = vector.shape_cast %100 : vector<7xf32> to vector<7x1xf32>
    %102 = vector.broadcast %101 : vector<7x1xf32> to vector<7x7xf32>
    %103 = arith.subf %99, %102 : vector<7x7xf32>
    %104 = math.exp %103 : vector<7x7xf32>
    %cst_41 = arith.constant dense<0.000000e+00> : vector<7xf32>
    %105 = vector.multi_reduction <add>, %104, %cst_41 [1] : vector<7x7xf32> to vector<7xf32>
    %106 = vector.shape_cast %105 : vector<7xf32> to vector<7x1xf32>
    %107 = vector.broadcast %106 : vector<7x1xf32> to vector<7x7xf32>
    %108 = arith.divf %104, %107 : vector<7x7xf32>
    %109 = arith.truncf %108 : vector<7x7xf32> to vector<7x7xbf16>
    %110 = arith.truncf %96 : vector<7x8xf32> to vector<7x8xbf16>
    %cst_42 = arith.constant dense<0.000000e+00> : vector<7x8xf32>
    %111 = tpu.matmul %109, %110, %cst_42 {dimension_numbers = #tpu.dot_dimension_numbers<[1], [0], [0], [1], [0, 0, 1, 1], [], []>} : vector<7x7xbf16>, vector<7x8xbf16>, vector<7x8xf32> -> vector<7x8xf32>
    %112 = vector.extract_strided_slice %57 {offsets = [0, 24], sizes = [7, 8], strides = [1, 1]} : vector<7x96xf32> to vector<7x8xf32>
    %113 = vector.extract_strided_slice %57 {offsets = [0, 56], sizes = [7, 8], strides = [1, 1]} : vector<7x96xf32> to vector<7x8xf32>
    %114 = vector.extract_strided_slice %57 {offsets = [0, 88], sizes = [7, 8], strides = [1, 1]} : vector<7x96xf32> to vector<7x8xf32>
    %115 = arith.truncf %112 : vector<7x8xf32> to vector<7x8xbf16>
    %116 = arith.truncf %113 : vector<7x8xf32> to vector<7x8xbf16>
    %cst_43 = arith.constant dense<0.000000e+00> : vector<7x7xf32>
    %117 = tpu.matmul %115, %116, %cst_43 {dimension_numbers = #tpu.dot_dimension_numbers<[1], [1], [0], [0], [0, 0, 1, 0], [], []>} : vector<7x8xbf16>, vector<7x8xbf16>, vector<7x7xf32> -> vector<7x7xf32>
    %cst_44 = arith.constant dense<0xFF800000> : vector<7xf32>
    %118 = vector.multi_reduction <maximumf>, %117, %cst_44 [1] : vector<7x7xf32> to vector<7xf32>
    %119 = vector.shape_cast %118 : vector<7xf32> to vector<7x1xf32>
    %120 = vector.broadcast %119 : vector<7x1xf32> to vector<7x7xf32>
    %121 = arith.subf %117, %120 : vector<7x7xf32>
    %122 = math.exp %121 : vector<7x7xf32>
    %cst_45 = arith.constant dense<0.000000e+00> : vector<7xf32>
    %123 = vector.multi_reduction <add>, %122, %cst_45 [1] : vector<7x7xf32> to vector<7xf32>
    %124 = vector.shape_cast %123 : vector<7xf32> to vector<7x1xf32>
    %125 = vector.broadcast %124 : vector<7x1xf32> to vector<7x7xf32>
    %126 = arith.divf %122, %125 : vector<7x7xf32>
    %127 = arith.truncf %126 : vector<7x7xf32> to vector<7x7xbf16>
    %128 = arith.truncf %114 : vector<7x8xf32> to vector<7x8xbf16>
    %cst_46 = arith.constant dense<0.000000e+00> : vector<7x8xf32>
    %129 = tpu.matmul %127, %128, %cst_46 {dimension_numbers = #tpu.dot_dimension_numbers<[1], [0], [0], [1], [0, 0, 1, 1], [], []>} : vector<7x7xbf16>, vector<7x8xbf16>, vector<7x8xf32> -> vector<7x8xf32>
    %130 = tpu.concatenate %75, %93, %111, %129 in 1 : vector<7x8xf32>, vector<7x8xf32>, vector<7x8xf32>, vector<7x8xf32> -> vector<7x32xf32>
    %131 = vector.extract_strided_slice %56 {offsets = [7, 0], sizes = [7, 96], strides = [1, 1]} : vector<14x96xf32> to vector<7x96xf32>
    %132 = vector.extract_strided_slice %131 {offsets = [0, 0], sizes = [7, 8], strides = [1, 1]} : vector<7x96xf32> to vector<7x8xf32>
    %133 = vector.extract_strided_slice %131 {offsets = [0, 32], sizes = [7, 8], strides = [1, 1]} : vector<7x96xf32> to vector<7x8xf32>
    %134 = vector.extract_strided_slice %131 {offsets = [0, 64], sizes = [7, 8], strides = [1, 1]} : vector<7x96xf32> to vector<7x8xf32>
    %135 = arith.truncf %132 : vector<7x8xf32> to vector<7x8xbf16>
    %136 = arith.truncf %133 : vector<7x8xf32> to vector<7x8xbf16>
    %cst_47 = arith.constant dense<0.000000e+00> : vector<7x7xf32>
    %137 = tpu.matmul %135, %136, %cst_47 {dimension_numbers = #tpu.dot_dimension_numbers<[1], [1], [0], [0], [0, 0, 1, 0], [], []>} : vector<7x8xbf16>, vector<7x8xbf16>, vector<7x7xf32> -> vector<7x7xf32>
    %cst_48 = arith.constant dense<0xFF800000> : vector<7xf32>
    %138 = vector.multi_reduction <maximumf>, %137, %cst_48 [1] : vector<7x7xf32> to vector<7xf32>
    %139 = vector.shape_cast %138 : vector<7xf32> to vector<7x1xf32>
    %140 = vector.broadcast %139 : vector<7x1xf32> to vector<7x7xf32>
    %141 = arith.subf %137, %140 : vector<7x7xf32>
    %142 = math.exp %141 : vector<7x7xf32>
    %cst_49 = arith.constant dense<0.000000e+00> : vector<7xf32>
    %143 = vector.multi_reduction <add>, %142, %cst_49 [1] : vector<7x7xf32> to vector<7xf32>
    %144 = vector.shape_cast %143 : vector<7xf32> to vector<7x1xf32>
    %145 = vector.broadcast %144 : vector<7x1xf32> to vector<7x7xf32>
    %146 = arith.divf %142, %145 : vector<7x7xf32>
    %147 = arith.truncf %146 : vector<7x7xf32> to vector<7x7xbf16>
    %148 = arith.truncf %134 : vector<7x8xf32> to vector<7x8xbf16>
    %cst_50 = arith.constant dense<0.000000e+00> : vector<7x8xf32>
    %149 = tpu.matmul %147, %148, %cst_50 {dimension_numbers = #tpu.dot_dimension_numbers<[1], [0], [0], [1], [0, 0, 1, 1], [], []>} : vector<7x7xbf16>, vector<7x8xbf16>, vector<7x8xf32> -> vector<7x8xf32>
    %150 = vector.extract_strided_slice %131 {offsets = [0, 8], sizes = [7, 8], strides = [1, 1]} : vector<7x96xf32> to vector<7x8xf32>
    %151 = vector.extract_strided_slice %131 {offsets = [0, 40], sizes = [7, 8], strides = [1, 1]} : vector<7x96xf32> to vector<7x8xf32>
    %152 = vector.extract_strided_slice %131 {offsets = [0, 72], sizes = [7, 8], strides = [1, 1]} : vector<7x96xf32> to vector<7x8xf32>
    %153 = arith.truncf %150 : vector<7x8xf32> to vector<7x8xbf16>
    %154 = arith.truncf %151 : vector<7x8xf32> to vector<7x8xbf16>
    %cst_51 = arith.constant dense<0.000000e+00> : vector<7x7xf32>
    %155 = tpu.matmul %153, %154, %cst_51 {dimension_numbers = #tpu.dot_dimension_numbers<[1], [1], [0], [0], [0, 0, 1, 0], [], []>} : vector<7x8xbf16>, vector<7x8xbf16>, vector<7x7xf32> -> vector<7x7xf32>
    %cst_52 = arith.constant dense<0xFF800000> : vector<7xf32>
    %156 = vector.multi_reduction <maximumf>, %155, %cst_52 [1] : vector<7x7xf32> to vector<7xf32>
    %157 = vector.shape_cast %156 : vector<7xf32> to vector<7x1xf32>
    %158 = vector.broadcast %157 : vector<7x1xf32> to vector<7x7xf32>
    %159 = arith.subf %155, %158 : vector<7x7xf32>
    %160 = math.exp %159 : vector<7x7xf32>
    %cst_53 = arith.constant dense<0.000000e+00> : vector<7xf32>
    %161 = vector.multi_reduction <add>, %160, %cst_53 [1] : vector<7x7xf32> to vector<7xf32>
    %162 = vector.shape_cast %161 : vector<7xf32> to vector<7x1xf32>
    %163 = vector.broadcast %162 : vector<7x1xf32> to vector<7x7xf32>
    %164 = arith.divf %160, %163 : vector<7x7xf32>
    %165 = arith.truncf %164 : vector<7x7xf32> to vector<7x7xbf16>
    %166 = arith.truncf %152 : vector<7x8xf32> to vector<7x8xbf16>
    %cst_54 = arith.constant dense<0.000000e+00> : vector<7x8xf32>
    %167 = tpu.matmul %165, %166, %cst_54 {dimension_numbers = #tpu.dot_dimension_numbers<[1], [0], [0], [1], [0, 0, 1, 1], [], []>} : vector<7x7xbf16>, vector<7x8xbf16>, vector<7x8xf32> -> vector<7x8xf32>
    %168 = vector.extract_strided_slice %131 {offsets = [0, 16], sizes = [7, 8], strides = [1, 1]} : vector<7x96xf32> to vector<7x8xf32>
    %169 = vector.extract_strided_slice %131 {offsets = [0, 48], sizes = [7, 8], strides = [1, 1]} : vector<7x96xf32> to vector<7x8xf32>
    %170 = vector.extract_strided_slice %131 {offsets = [0, 80], sizes = [7, 8], strides = [1, 1]} : vector<7x96xf32> to vector<7x8xf32>
    %171 = arith.truncf %168 : vector<7x8xf32> to vector<7x8xbf16>
    %172 = arith.truncf %169 : vector<7x8xf32> to vector<7x8xbf16>
    %cst_55 = arith.constant dense<0.000000e+00> : vector<7x7xf32>
    %173 = tpu.matmul %171, %172, %cst_55 {dimension_numbers = #tpu.dot_dimension_numbers<[1], [1], [0], [0], [0, 0, 1, 0], [], []>} : vector<7x8xbf16>, vector<7x8xbf16>, vector<7x7xf32> -> vector<7x7xf32>
    %cst_56 = arith.constant dense<0xFF800000> : vector<7xf32>
    %174 = vector.multi_reduction <maximumf>, %173, %cst_56 [1] : vector<7x7xf32> to vector<7xf32>
    %175 = vector.shape_cast %174 : vector<7xf32> to vector<7x1xf32>
    %176 = vector.broadcast %175 : vector<7x1xf32> to vector<7x7xf32>
    %177 = arith.subf %173, %176 : vector<7x7xf32>
    %178 = math.exp %177 : vector<7x7xf32>
    %cst_57 = arith.constant dense<0.000000e+00> : vector<7xf32>
    %179 = vector.multi_reduction <add>, %178, %cst_57 [1] : vector<7x7xf32> to vector<7xf32>
    %180 = vector.shape_cast %179 : vector<7xf32> to vector<7x1xf32>
    %181 = vector.broadcast %180 : vector<7x1xf32> to vector<7x7xf32>
    %182 = arith.divf %178, %181 : vector<7x7xf32>
    %183 = arith.truncf %182 : vector<7x7xf32> to vector<7x7xbf16>
    %184 = arith.truncf %170 : vector<7x8xf32> to vector<7x8xbf16>
    %cst_58 = arith.constant dense<0.000000e+00> : vector<7x8xf32>
    %185 = tpu.matmul %183, %184, %cst_58 {dimension_numbers = #tpu.dot_dimension_numbers<[1], [0], [0], [1], [0, 0, 1, 1], [], []>} : vector<7x7xbf16>, vector<7x8xbf16>, vector<7x8xf32> -> vector<7x8xf32>
    %186 = vector.extract_strided_slice %131 {offsets = [0, 24], sizes = [7, 8], strides = [1, 1]} : vector<7x96xf32> to vector<7x8xf32>
    %187 = vector.extract_strided_slice %131 {offsets = [0, 56], sizes = [7, 8], strides = [1, 1]} : vector<7x96xf32> to vector<7x8xf32>
    %188 = vector.extract_strided_slice %131 {offsets = [0, 88], sizes = [7, 8], strides = [1, 1]} : vector<7x96xf32> to vector<7x8xf32>
    %189 = arith.truncf %186 : vector<7x8xf32> to vector<7x8xbf16>
    %190 = arith.truncf %187 : vector<7x8xf32> to vector<7x8xbf16>
    %cst_59 = arith.constant dense<0.000000e+00> : vector<7x7xf32>
    %191 = tpu.matmul %189, %190, %cst_59 {dimension_numbers = #tpu.dot_dimension_numbers<[1], [1], [0], [0], [0, 0, 1, 0], [], []>} : vector<7x8xbf16>, vector<7x8xbf16>, vector<7x7xf32> -> vector<7x7xf32>
    %cst_60 = arith.constant dense<0xFF800000> : vector<7xf32>
    %192 = vector.multi_reduction <maximumf>, %191, %cst_60 [1] : vector<7x7xf32> to vector<7xf32>
    %193 = vector.shape_cast %192 : vector<7xf32> to vector<7x1xf32>
    %194 = vector.broadcast %193 : vector<7x1xf32> to vector<7x7xf32>
    %195 = arith.subf %191, %194 : vector<7x7xf32>
    %196 = math.exp %195 : vector<7x7xf32>
    %cst_61 = arith.constant dense<0.000000e+00> : vector<7xf32>
    %197 = vector.multi_reduction <add>, %196, %cst_61 [1] : vector<7x7xf32> to vector<7xf32>
    %198 = vector.shape_cast %197 : vector<7xf32> to vector<7x1xf32>
    %199 = vector.broadcast %198 : vector<7x1xf32> to vector<7x7xf32>
    %200 = arith.divf %196, %199 : vector<7x7xf32>
    %201 = arith.truncf %200 : vector<7x7xf32> to vector<7x7xbf16>
    %202 = arith.truncf %188 : vector<7x8xf32> to vector<7x8xbf16>
    %cst_62 = arith.constant dense<0.000000e+00> : vector<7x8xf32>
    %203 = tpu.matmul %201, %202, %cst_62 {dimension_numbers = #tpu.dot_dimension_numbers<[1], [0], [0], [1], [0, 0, 1, 1], [], []>} : vector<7x7xbf16>, vector<7x8xbf16>, vector<7x8xf32> -> vector<7x8xf32>
    %204 = tpu.concatenate %149, %167, %185, %203 in 1 : vector<7x8xf32>, vector<7x8xf32>, vector<7x8xf32>, vector<7x8xf32> -> vector<7x32xf32>
    %205 = tpu.concatenate %130, %204 in 0 : vector<7x32xf32>, vector<7x32xf32> -> vector<14x32xf32>
    %206 = arith.truncf %205 : vector<14x32xf32> to vector<14x32xbf16>
    %cst_63 = arith.constant dense<0.000000e+00> : vector<14x32xf32>
    %207 = tpu.matmul %206, %50, %cst_63 {dimension_numbers = #tpu.dot_dimension_numbers<[1], [0], [0], [1], [0, 0, 1, 1], [], []>} : vector<14x32xbf16>, vector<32x32xbf16>, vector<14x32xf32> -> vector<14x32xf32>
    %208 = vector.broadcast %52 : vector<1x32xf32> to vector<14x32xf32>
    %209 = arith.addf %207, %208 : vector<14x32xf32>
    %210 = arith.addf %44, %209 : vector<14x32xf32>
    %c0_64 = arith.constant 0 : index
    %c0_65 = arith.constant 0 : index
    %c0_66 = arith.constant 0 : index
    %211 = vector.load %arg8[%c0_64, %c0_65, %c0_66] : memref<1x1x32xf32, #tpu.memory_space<vmem>>, vector<1x1x32xf32>
    %212 = vector.shape_cast %211 : vector<1x1x32xf32> to vector<1x32xf32>
    %c0_67 = arith.constant 0 : index
    %c0_68 = arith.constant 0 : index
    %c0_69 = arith.constant 0 : index
    %213 = vector.load %arg9[%c0_67, %c0_68, %c0_69] : memref<1x1x32xf32, #tpu.memory_space<vmem>>, vector<1x1x32xf32>
    %214 = vector.shape_cast %213 : vector<1x1x32xf32> to vector<1x32xf32>
    %cst_70 = arith.constant dense<0.000000e+00> : vector<14xf32>
    %215 = vector.multi_reduction <add>, %210, %cst_70 [1] : vector<14x32xf32> to vector<14xf32>
    %216 = vector.shape_cast %215 : vector<14xf32> to vector<14x1xf32>
    %cst_71 = arith.constant 3.200000e+01 : f32
    %217 = vector.broadcast %cst_71 : f32 to vector<14x1xf32>
    %218 = arith.divf %216, %217 : vector<14x1xf32>
    %219 = vector.broadcast %218 : vector<14x1xf32> to vector<14x32xf32>
    %220 = arith.subf %210, %219 : vector<14x32xf32>
    %221 = arith.mulf %220, %220 : vector<14x32xf32>
    %cst_72 = arith.constant dense<0.000000e+00> : vector<14xf32>
    %222 = vector.multi_reduction <add>, %221, %cst_72 [1] : vector<14x32xf32> to vector<14xf32>
    %223 = vector.shape_cast %222 : vector<14xf32> to vector<14x1xf32>
    %cst_73 = arith.constant 3.200000e+01 : f32
    %224 = vector.broadcast %cst_73 : f32 to vector<14x1xf32>
    %225 = arith.divf %223, %224 : vector<14x1xf32>
    %cst_74 = arith.constant 9.99999974E-6 : f32
    %226 = vector.broadcast %cst_74 : f32 to vector<14x1xf32>
    %227 = arith.addf %225, %226 : vector<14x1xf32>
    %228 = math.rsqrt %227 : vector<14x1xf32>
    %229 = vector.broadcast %228 : vector<14x1xf32> to vector<14x32xf32>
    %230 = arith.mulf %220, %229 : vector<14x32xf32>
    %231 = vector.broadcast %212 : vector<1x32xf32> to vector<14x32xf32>
    %232 = arith.mulf %230, %231 : vector<14x32xf32>
    %233 = vector.broadcast %214 : vector<1x32xf32> to vector<14x32xf32>
    %234 = arith.addf %232, %233 : vector<14x32xf32>
    %c0_75 = arith.constant 0 : index
    %c0_76 = arith.constant 0 : index
    %c0_77 = arith.constant 0 : index
    %235 = vector.load %arg10[%c0_75, %c0_76, %c0_77] : memref<1x32x64xbf16, #tpu.memory_space<vmem>>, vector<1x32x64xbf16>
    %236 = vector.shape_cast %235 : vector<1x32x64xbf16> to vector<32x64xbf16>
    %237 = arith.truncf %234 : vector<14x32xf32> to vector<14x32xbf16>
    %cst_78 = arith.constant dense<0.000000e+00> : vector<14x64xf32>
    %238 = tpu.matmul %237, %236, %cst_78 {dimension_numbers = #tpu.dot_dimension_numbers<[1], [0], [0], [1], [0, 0, 1, 1], [], []>} : vector<14x32xbf16>, vector<32x64xbf16>, vector<14x64xf32> -> vector<14x64xf32>
    %c0_79 = arith.constant 0 : index
    %c0_80 = arith.constant 0 : index
    %c0_81 = arith.constant 0 : index
    %239 = vector.load %arg11[%c0_79, %c0_80, %c0_81] : memref<1x1x64xf32, #tpu.memory_space<vmem>>, vector<1x1x64xf32>
    %240 = vector.shape_cast %239 : vector<1x1x64xf32> to vector<1x64xf32>
    %241 = vector.broadcast %240 : vector<1x64xf32> to vector<14x64xf32>
    %242 = arith.addf %238, %241 : vector<14x64xf32>
    %cst_82 = arith.constant 0.000000e+00 : f32
    %243 = vector.broadcast %cst_82 : f32 to vector<14x64xf32>
    %244 = arith.maximumf %242, %243 : vector<14x64xf32>
    %c0_83 = arith.constant 0 : index
    %c0_84 = arith.constant 0 : index
    %c0_85 = arith.constant 0 : index
    %245 = vector.load %arg12[%c0_83, %c0_84, %c0_85] : memref<1x64x32xbf16, #tpu.memory_space<vmem>>, vector<1x64x32xbf16>
    %246 = vector.shape_cast %245 : vector<1x64x32xbf16> to vector<64x32xbf16>
    %247 = arith.truncf %244 : vector<14x64xf32> to vector<14x64xbf16>
    %cst_86 = arith.constant dense<0.000000e+00> : vector<14x32xf32>
    %248 = tpu.matmul %247, %246, %cst_86 {dimension_numbers = #tpu.dot_dimension_numbers<[1], [0], [0], [1], [0, 0, 1, 1], [], []>} : vector<14x64xbf16>, vector<64x32xbf16>, vector<14x32xf32> -> vector<14x32xf32>
    %c0_87 = arith.constant 0 : index
    %c0_88 = arith.constant 0 : index
    %c0_89 = arith.constant 0 : index
    %249 = vector.load %arg13[%c0_87, %c0_88, %c0_89] : memref<1x1x32xf32, #tpu.memory_space<vmem>>, vector<1x1x32xf32>
    %250 = vector.shape_cast %249 : vector<1x1x32xf32> to vector<1x32xf32>
    %251 = vector.broadcast %250 : vector<1x32xf32> to vector<14x32xf32>
    %252 = arith.addf %248, %251 : vector<14x32xf32>
    %253 = arith.addf %234, %252 : vector<14x32xf32>
    %c0_90 = arith.constant 0 : index
    %c0_91 = arith.constant 0 : index
    %c0_92 = arith.constant 0 : index
    %254 = vector.load %arg14[%c0_90, %c0_91, %c0_92] : memref<1x1x32xf32, #tpu.memory_space<vmem>>, vector<1x1x32xf32>
    %255 = vector.shape_cast %254 : vector<1x1x32xf32> to vector<1x32xf32>
    %c0_93 = arith.constant 0 : index
    %c0_94 = arith.constant 0 : index
    %c0_95 = arith.constant 0 : index
    %256 = vector.load %arg15[%c0_93, %c0_94, %c0_95] : memref<1x1x32xf32, #tpu.memory_space<vmem>>, vector<1x1x32xf32>
    %257 = vector.shape_cast %256 : vector<1x1x32xf32> to vector<1x32xf32>
    %cst_96 = arith.constant dense<0.000000e+00> : vector<14xf32>
    %258 = vector.multi_reduction <add>, %253, %cst_96 [1] : vector<14x32xf32> to vector<14xf32>
    %259 = vector.shape_cast %258 : vector<14xf32> to vector<14x1xf32>
    %cst_97 = arith.constant 3.200000e+01 : f32
    %260 = vector.broadcast %cst_97 : f32 to vector<14x1xf32>
    %261 = arith.divf %259, %260 : vector<14x1xf32>
    %262 = vector.broadcast %261 : vector<14x1xf32> to vector<14x32xf32>
    %263 = arith.subf %253, %262 : vector<14x32xf32>
    %264 = arith.mulf %263, %263 : vector<14x32xf32>
    %cst_98 = arith.constant dense<0.000000e+00> : vector<14xf32>
    %265 = vector.multi_reduction <add>, %264, %cst_98 [1] : vector<14x32xf32> to vector<14xf32>
    %266 = vector.shape_cast %265 : vector<14xf32> to vector<14x1xf32>
    %cst_99 = arith.constant 3.200000e+01 : f32
    %267 = vector.broadcast %cst_99 : f32 to vector<14x1xf32>
    %268 = arith.divf %266, %267 : vector<14x1xf32>
    %cst_100 = arith.constant 9.99999974E-6 : f32
    %269 = vector.broadcast %cst_100 : f32 to vector<14x1xf32>
    %270 = arith.addf %268, %269 : vector<14x1xf32>
    %271 = math.rsqrt %270 : vector<14x1xf32>
    %272 = vector.broadcast %271 : vector<14x1xf32> to vector<14x32xf32>
    %273 = arith.mulf %263, %272 : vector<14x32xf32>
    %274 = vector.broadcast %255 : vector<1x32xf32> to vector<14x32xf32>
    %275 = arith.mulf %273, %274 : vector<14x32xf32>
    %276 = vector.broadcast %257 : vector<1x32xf32> to vector<14x32xf32>
    %277 = arith.addf %275, %276 : vector<14x32xf32>
    %c0_101 = arith.constant 0 : index
    %c0_102 = arith.constant 0 : index
    %c0_103 = arith.constant 0 : index
    %278 = vector.load %arg16[%c0_101, %c0_102, %c0_103] : memref<1x1x32xf32, #tpu.memory_space<vmem>>, vector<1x1x32xf32>
    %279 = vector.shape_cast %278 : vector<1x1x32xf32> to vector<1x32xf32>
    %c0_104 = arith.constant 0 : index
    %c0_105 = arith.constant 0 : index
    %c0_106 = arith.constant 0 : index
    %280 = vector.load %arg17[%c0_104, %c0_105, %c0_106] : memref<1x1x32xf32, #tpu.memory_space<vmem>>, vector<1x1x32xf32>
    %281 = vector.shape_cast %280 : vector<1x1x32xf32> to vector<1x32xf32>
    %cst_107 = arith.constant dense<0.000000e+00> : vector<14xf32>
    %282 = vector.multi_reduction <add>, %277, %cst_107 [1] : vector<14x32xf32> to vector<14xf32>
    %283 = vector.shape_cast %282 : vector<14xf32> to vector<14x1xf32>
    %cst_108 = arith.constant 3.200000e+01 : f32
    %284 = vector.broadcast %cst_108 : f32 to vector<14x1xf32>
    %285 = arith.divf %283, %284 : vector<14x1xf32>
    %286 = vector.broadcast %285 : vector<14x1xf32> to vector<14x32xf32>
    %287 = arith.subf %277, %286 : vector<14x32xf32>
    %288 = arith.mulf %287, %287 : vector<14x32xf32>
    %cst_109 = arith.constant dense<0.000000e+00> : vector<14xf32>
    %289 = vector.multi_reduction <add>, %288, %cst_109 [1] : vector<14x32xf32> to vector<14xf32>
    %290 = vector.shape_cast %289 : vector<14xf32> to vector<14x1xf32>
    %cst_110 = arith.constant 3.200000e+01 : f32
    %291 = vector.broadcast %cst_110 : f32 to vector<14x1xf32>
    %292 = arith.divf %290, %291 : vector<14x1xf32>
    %cst_111 = arith.constant 9.99999974E-6 : f32
    %293 = vector.broadcast %cst_111 : f32 to vector<14x1xf32>
    %294 = arith.addf %292, %293 : vector<14x1xf32>
    %295 = math.rsqrt %294 : vector<14x1xf32>
    %296 = vector.broadcast %295 : vector<14x1xf32> to vector<14x32xf32>
    %297 = arith.mulf %287, %296 : vector<14x32xf32>
    %298 = vector.broadcast %279 : vector<1x32xf32> to vector<14x32xf32>
    %299 = arith.mulf %297, %298 : vector<14x32xf32>
    %300 = vector.broadcast %281 : vector<1x32xf32> to vector<14x32xf32>
    %301 = arith.addf %299, %300 : vector<14x32xf32>
    %302 = vector.extract_strided_slice %301 {offsets = [0, 0], sizes = [7, 32], strides = [1, 1]} : vector<14x32xf32> to vector<7x32xf32>
    %c0_112 = arith.constant 0 : index
    %c0_113 = arith.constant 0 : index
    %c0_114 = arith.constant 0 : index
    %c0_115 = arith.constant 0 : index
    %303 = vector.load %arg18[%c0_112, %c0_113, %c0_114, %c0_115] : memref<1x2x7x32xf32, #tpu.memory_space<vmem>>, vector<1x1x7x32xf32>
    %304 = vector.shape_cast %303 : vector<1x1x7x32xf32> to vector<7x32xf32>
    %305 = vector.shape_cast %302 : vector<7x32xf32> to vector<1x1x7x32xf32>
    tpu.vector_store %arg18[%c0_112, %c0_113, %c0_114, %c0_115], %305 {strides = array<i32>} : memref<1x2x7x32xf32, #tpu.memory_space<vmem>>, vector<1x1x7x32xf32>,
    %306 = vector.extract_strided_slice %301 {offsets = [7, 0], sizes = [7, 32], strides = [1, 1]} : vector<14x32xf32> to vector<7x32xf32>
    %c0_116 = arith.constant 0 : index
    %c1 = arith.constant 1 : index
    %c0_117 = arith.constant 0 : index
    %c0_118 = arith.constant 0 : index
    %307 = vector.load %arg18[%c0_116, %c1, %c0_117, %c0_118] : memref<1x2x7x32xf32, #tpu.memory_space<vmem>>, vector<1x1x7x32xf32>
    %308 = vector.shape_cast %307 : vector<1x1x7x32xf32> to vector<7x32xf32>
    %309 = vector.shape_cast %306 : vector<7x32xf32> to vector<1x1x7x32xf32>
    tpu.vector_store %arg18[%c0_116, %c1, %c0_117, %c0_118], %309 {strides = array<i32>} : memref<1x2x7x32xf32, #tpu.memory_space<vmem>>, vector<1x1x7x32xf32>,
    return
  }
  func.func @transform_0(%arg0: i32) -> (i32, i32, i32, i32) {
    %c0_i32 = arith.constant 0 : i32
    %c0_i32_0 = arith.constant 0 : i32
    %c0_i32_1 = arith.constant 0 : i32
    %c0_i32_2 = arith.constant 0 : i32
    return %arg0, %c0_i32, %c0_i32_0, %c0_i32_1 : i32, i32, i32, i32
  }
  func.func @transform_1(%arg0: i32) -> (i32, i32, i32) {
    %c0_i32 = arith.constant 0 : i32
    %c0_i32_0 = arith.constant 0 : i32
    %c0_i32_1 = arith.constant 0 : i32
    return %arg0, %c0_i32, %c0_i32_0 : i32, i32, i32
  }
  func.func @transform_2(%arg0: i32) -> (i32, i32, i32) {
    %c0_i32 = arith.constant 0 : i32
    %c0_i32_0 = arith.constant 0 : i32
    %c0_i32_1 = arith.constant 0 : i32
    return %arg0, %c0_i32, %c0_i32_0 : i32, i32, i32
  }
  func.func @transform_3(%arg0: i32) -> (i32, i32, i32) {
    %c0_i32 = arith.constant 0 : i32
    %c0_i32_0 = arith.constant 0 : i32
    %c0_i32_1 = arith.constant 0 : i32
    return %arg0, %c0_i32, %c0_i32_0 : i32, i32, i32
  }
  func.func @transform_4(%arg0: i32) -> (i32, i32, i32) {
    %c0_i32 = arith.constant 0 : i32
    %c0_i32_0 = arith.constant 0 : i32
    %c0_i32_1 = arith.constant 0 : i32
    return %arg0, %c0_i32, %c0_i32_0 : i32, i32, i32
  }
  func.func @transform_5(%arg0: i32) -> (i32, i32, i32) {
    %c0_i32 = arith.constant 0 : i32
    %c0_i32_0 = arith.constant 0 : i32
    %c0_i32_1 = arith.constant 0 : i32
    return %arg0, %c0_i32, %c0_i32_0 : i32, i32, i32
  }
  func.func @transform_6(%arg0: i32) -> (i32, i32, i32) {
    %c0_i32 = arith.constant 0 : i32
    %c0_i32_0 = arith.constant 0 : i32
    %c0_i32_1 = arith.constant 0 : i32
    return %arg0, %c0_i32, %c0_i32_0 : i32, i32, i32
  }
  func.func @transform_7(%arg0: i32) -> (i32, i32, i32) {
    %c0_i32 = arith.constant 0 : i32
    %c0_i32_0 = arith.constant 0 : i32
    %c0_i32_1 = arith.constant 0 : i32
    return %arg0, %c0_i32, %c0_i32_0 : i32, i32, i32
  }
  func.func @transform_8(%arg0: i32) -> (i32, i32, i32) {
    %c0_i32 = arith.constant 0 : i32
    %c0_i32_0 = arith.constant 0 : i32
    %c0_i32_1 = arith.constant 0 : i32
    return %arg0, %c0_i32, %c0_i32_0 : i32, i32, i32
  }
  func.func @transform_9(%arg0: i32) -> (i32, i32, i32) {
    %c0_i32 = arith.constant 0 : i32
    %c0_i32_0 = arith.constant 0 : i32
    %c0_i32_1 = arith.constant 0 : i32
    return %arg0, %c0_i32, %c0_i32_0 : i32, i32, i32
  }
  func.func @transform_10(%arg0: i32) -> (i32, i32, i32) {
    %c0_i32 = arith.constant 0 : i32
    %c0_i32_0 = arith.constant 0 : i32
    %c0_i32_1 = arith.constant 0 : i32
    return %arg0, %c0_i32, %c0_i32_0 : i32, i32, i32
  }
  func.func @transform_11(%arg0: i32) -> (i32, i32, i32) {
    %c0_i32 = arith.constant 0 : i32
    %c0_i32_0 = arith.constant 0 : i32
    %c0_i32_1 = arith.constant 0 : i32
    return %arg0, %c0_i32, %c0_i32_0 : i32, i32, i32
  }
  func.func @transform_12(%arg0: i32) -> (i32, i32, i32) {
    %c0_i32 = arith.constant 0 : i32
    %c0_i32_0 = arith.constant 0 : i32
    %c0_i32_1 = arith.constant 0 : i32
    return %arg0, %c0_i32, %c0_i32_0 : i32, i32, i32
  }
  func.func @transform_13(%arg0: i32) -> (i32, i32, i32) {
    %c0_i32 = arith.constant 0 : i32
    %c0_i32_0 = arith.constant 0 : i32
    %c0_i32_1 = arith.constant 0 : i32
    return %arg0, %c0_i32, %c0_i32_0 : i32, i32, i32
  }
  func.func @transform_14(%arg0: i32) -> (i32, i32, i32) {
    %c0_i32 = arith.constant 0 : i32
    %c0_i32_0 = arith.constant 0 : i32
    %c0_i32_1 = arith.constant 0 : i32
    return %arg0, %c0_i32, %c0_i32_0 : i32, i32, i32
  }
  func.func @transform_15(%arg0: i32) -> (i32, i32, i32) {
    %c0_i32 = arith.constant 0 : i32
    %c0_i32_0 = arith.constant 0 : i32
    %c0_i32_1 = arith.constant 0 : i32
    return %arg0, %c0_i32, %c0_i32_0 : i32, i32, i32
  }
  func.func @transform_16(%arg0: i32) -> (i32, i32, i32) {
    %c0_i32 = arith.constant 0 : i32
    %c0_i32_0 = arith.constant 0 : i32
    %c0_i32_1 = arith.constant 0 : i32
    return %arg0, %c0_i32, %c0_i32_0 : i32, i32, i32
  }
  func.func @transform_17(%arg0: i32) -> (i32, i32, i32, i32) {
    %c0_i32 = arith.constant 0 : i32
    %c0_i32_0 = arith.constant 0 : i32
    %c0_i32_1 = arith.constant 0 : i32
    %c0_i32_2 = arith.constant 0 : i32
    return %arg0, %c0_i32, %c0_i32_0, %c0_i32_1 : i32, i32, i32, i32
  }
  func.func @transform_18(%arg0: i32) -> (i32, i32, i32, i32) {
    %c0_i32 = arith.constant 0 : i32
    %c0_i32_0 = arith.constant 0 : i32
    %c0_i32_1 = arith.constant 0 : i32
    %c0_i32_2 = arith.constant 0 : i32
    return %arg0, %c0_i32, %c0_i32_0, %c0_i32_1 : i32, i32, i32, i32
  }
}

</mosaic_0001>

<llo_original>
// kernel: tpu_custom_call.1
$region0: #{tpu_custom_call.1}
  #allocation0 [shape = 'u32[]', space=smem, size = 0x4, offset = 0x4, fixed_abs, tag = 'smem constant byte address 0x4 - core index']
  #allocation1 [shape = 'u32[72,128]{1,0:T(1,128)}', space=vmem, size = 0x9000, scoped, tag = 'internal scratch']
  %s0 = inlined_call_operand.vmem [shape: f32[2,2,7,16], index: 0, kind: input, shape index: {}]
  %s1 = inlined_call_operand.vmem [shape: bf16[2,16,32], index: 1, kind: input, shape index: {}]
  %s2 = inlined_call_operand.vmem [shape: f32[2,1,32], index: 2, kind: input, shape index: {}]
  %s3 = inlined_call_operand.vmem [shape: bf16[2,32,96], index: 3, kind: input, shape index: {}]
  %s4 = inlined_call_operand.vmem [shape: f32[2,1,96], index: 4, kind: input, shape index: {}]
  %s5 = inlined_call_operand.vmem [shape: bf16[2,32,32], index: 5, kind: input, shape index: {}]
  %s6 = inlined_call_operand.vmem [shape: f32[2,1,32], index: 6, kind: input, shape index: {}]
  %s7 = inlined_call_operand.vmem [shape: f32[2,1,32], index: 7, kind: input, shape index: {}]
  %s8 = inlined_call_operand.vmem [shape: f32[2,1,32], index: 8, kind: input, shape index: {}]
  %s9 = inlined_call_operand.vmem [shape: bf16[2,32,64], index: 9, kind: input, shape index: {}]
  %s10 = inlined_call_operand.vmem [shape: f32[2,1,64], index: 10, kind: input, shape index: {}]
  %s11 = inlined_call_operand.vmem [shape: bf16[2,64,32], index: 11, kind: input, shape index: {}]
  %s12 = inlined_call_operand.vmem [shape: f32[2,1,32], index: 12, kind: input, shape index: {}]
  %s13 = inlined_call_operand.vmem [shape: f32[2,1,32], index: 13, kind: input, shape index: {}]
  %s14 = inlined_call_operand.vmem [shape: f32[2,1,32], index: 14, kind: input, shape index: {}]
  %s15 = inlined_call_operand.vmem [shape: f32[2,1,32], index: 15, kind: input, shape index: {}]
  %s16 = inlined_call_operand.vmem [shape: f32[2,1,32], index: 16, kind: input, shape index: {}]
  %s17 = inlined_call_operand.vmem [shape: f32[2,2,7,32], index: 17, kind: output, shape index: {0}]
  %s18 = inlined_call_operand.hbm [shape: f32[2,2,2,4], index: 18, kind: output, shape index: {1}]
  %19 = xla_tuple %s17, %s18
  %s20 = sld [smem:[#allocation0]]
  $region109: #{tpu_custom_call.1} parent=0
    _
  %s22 = ssub.s32 1, %s20
  %s23 = scalar_select 0, %s22, %s20
  $region1: #{tpu_custom_call.1} parent=0
    #allocation2 [shape = 'u8[4096]{0}', space=vmem, size = 0x1000, scoped, tag = 'output window, operand 1']
    #allocation3 [shape = 's32[2]{0}', space=sflag, size = 0x8, scoped, tag = 'scoped memory for tpu_custom_call.1']
    %24 = vsyncpa [#allocation3], 0
    %s25 = scalar_lea.sflag [#allocation3], 1
    %26 = vsyncpa %s25, 0
    loop: start=0, step=1, limit=4
    $region2: #{tpu_custom_call.1} parent=1 // loop_pre_header
      _
    $region3: #{tpu_custom_call.1} parent=1 // loop_header
      %s28 = sphi 0, %s32
      %p29 = scmp.ge.s32.totalorder %s28, 4
      %s38 = sphi 0, %s40
      %s41 = sphi 0, %s38
      %s42 = sphi 0, %s41
      %s58 = sphi 0, %s42
      %s64 = sphi 0, %s66
      %s67 = sphi 0, %s64
      %s68 = sphi 0, %s67
      %s84 = sphi 0, %s68
      %s90 = sphi 0, %s92
      %s93 = sphi 0, %s90
      %s94 = sphi 0, %s93
      %s110 = sphi 0, %s94
      %s116 = sphi 0, %s118
      %s119 = sphi 0, %s116
      %s120 = sphi 0, %s119
      %s136 = sphi 0, %s120
      %s142 = sphi 0, %s144
      %s145 = sphi 0, %s142
      %s146 = sphi 0, %s145
      %s162 = sphi 0, %s146
      %s168 = sphi 0, %s170
      %s171 = sphi 0, %s168
      %s172 = sphi 0, %s171
      %s188 = sphi 0, %s172
      %s194 = sphi 0, %s196
      %s197 = sphi 0, %s194
      %s198 = sphi 0, %s197
      %s214 = sphi 0, %s198
      %s220 = sphi 0, %s222
      %s223 = sphi 0, %s220
      %s224 = sphi 0, %s223
      %s240 = sphi 0, %s224
      %s246 = sphi 0, %s248
      %s249 = sphi 0, %s246
      %s250 = sphi 0, %s249
      %s266 = sphi 0, %s250
      %s272 = sphi 0, %s274
      %s275 = sphi 0, %s272
      %s276 = sphi 0, %s275
      %s292 = sphi 0, %s276
      %s298 = sphi 0, %s300
      %s301 = sphi 0, %s298
      %s302 = sphi 0, %s301
      %s318 = sphi 0, %s302
      %s324 = sphi 0, %s326
      %s327 = sphi 0, %s324
      %s328 = sphi 0, %s327
      %s344 = sphi 0, %s328
      %s350 = sphi 0, %s352
      %s353 = sphi 0, %s350
      %s354 = sphi 0, %s353
      %s370 = sphi 0, %s354
      %s376 = sphi 0, %s378
      %s379 = sphi 0, %s376
      %s380 = sphi 0, %s379
      %s396 = sphi 0, %s380
      %s402 = sphi 0, %s404
      %s405 = sphi 0, %s402
      %s406 = sphi 0, %s405
      %s422 = sphi 0, %s406
      %s428 = sphi 0, %s430
      %s431 = sphi 0, %s428
      %s432 = sphi 0, %s431
      %s448 = sphi 0, %s432
      %s454 = sphi 0, %s456
      %s457 = sphi 0, %s454
      %s458 = sphi 0, %s457
      %s474 = sphi 0, %s458
      %s480 = sphi 0, %s482
      %s483 = sphi 0, %s480
      %s484 = sphi 0, %s483
      %s500 = sphi 0, %s484
      %s506 = sphi 0, %s508
      %s509 = sphi 0, %s506
      %s510 = sphi 0, %s509
      %s526 = sphi 0, %s510
    $region4: #{tpu_custom_call.1} parent=1 // loop_header_branch
      %31 = sbr.rel (%p29) target = $region8
    $region5: #{tpu_custom_call.1} parent=1 // loop_body
      %s33 = ssub.s32 %s28, 1
      %s34 = ssub.s32 %s28, 2
      %s35 = sadd.s32 %s28, 1
      %s36 = ssub.s32 %s28, %s35
      %p37 = scmp.eq.s32.totalorder %s36, 0
      %s39 = sadd.s32 %s38, 1
      %s40 = scalar_select %p37, %s38, %s39
      %p43 = pneg %p37
      %p44 = scmp.eq.s32.totalorder %s28, 1
      %p45 = por %p43, %p44
      %p46 = scmp.ne.s32.totalorder %s38, %s41
      %p47 = scmp.eq.s32.totalorder %s28, 0
      %p48 = por %p46, %p47
      %p49 = scmp.ne.s32.totalorder %s38, %s41
      %p50 = scmp.eq.s32.totalorder %s33, 1
      %p51 = por %p49, %p50
      %p52 = scmp.ne.s32.totalorder %s41, %s42
      %p53 = scmp.eq.s32.totalorder %s33, 0
      %p54 = por %p52, %p53
      %p55 = scmp.ne.s32.totalorder %s41, %s42
      %p56 = scmp.eq.s32.totalorder %s34, 1
      %p57 = por %p55, %p56
      %p59 = scmp.ne.s32.totalorder %s42, %s58
      %p60 = scmp.eq.s32.totalorder %s34, 0
      %p61 = por %p59, %p60
      %s62 = ssub.s32 %s28, %s35
      %p63 = scmp.eq.s32.totalorder %s62, 0
      %s65 = sadd.s32 %s64, 1
      %s66 = scalar_select %p63, %s64, %s65
      %p69 = pneg %p63
      %p70 = scmp.eq.s32.totalorder %s28, 1
      %p71 = por %p69, %p70
      %p72 = scmp.ne.s32.totalorder %s64, %s67
      %p73 = scmp.eq.s32.totalorder %s28, 0
      %p74 = por %p72, %p73
      %p75 = scmp.ne.s32.totalorder %s64, %s67
      %p76 = scmp.eq.s32.totalorder %s33, 1
      %p77 = por %p75, %p76
      %p78 = scmp.ne.s32.totalorder %s67, %s68
      %p79 = scmp.eq.s32.totalorder %s33, 0
      %p80 = por %p78, %p79
      %p81 = scmp.ne.s32.totalorder %s67, %s68
      %p82 = scmp.eq.s32.totalorder %s34, 1
      %p83 = por %p81, %p82
      %p85 = scmp.ne.s32.totalorder %s68, %s84
      %p86 = scmp.eq.s32.totalorder %s34, 0
      %p87 = por %p85, %p86
      %s88 = ssub.s32 %s28, %s35
      %p89 = scmp.eq.s32.totalorder %s88, 0
      %s91 = sadd.s32 %s90, 1
      %s92 = scalar_select %p89, %s90, %s91
      %p95 = pneg %p89
      %p96 = scmp.eq.s32.totalorder %s28, 1
      %p97 = por %p95, %p96
      %p98 = scmp.ne.s32.totalorder %s90, %s93
      %p99 = scmp.eq.s32.totalorder %s28, 0
      %p100 = por %p98, %p99
      %p101 = scmp.ne.s32.totalorder %s90, %s93
      %p102 = scmp.eq.s32.totalorder %s33, 1
      %p103 = por %p101, %p102
      %p104 = scmp.ne.s32.totalorder %s93, %s94
      %p105 = scmp.eq.s32.totalorder %s33, 0
      %p106 = por %p104, %p105
      %p107 = scmp.ne.s32.totalorder %s93, %s94
      %p108 = scmp.eq.s32.totalorder %s34, 1
      %p109 = por %p107, %p108
      %p111 = scmp.ne.s32.totalorder %s94, %s110
      %p112 = scmp.eq.s32.totalorder %s34, 0
      %p113 = por %p111, %p112
      %s114 = ssub.s32 %s28, %s35
      %p115 = scmp.eq.s32.totalorder %s114, 0
      %s117 = sadd.s32 %s116, 1
      %s118 = scalar_select %p115, %s116, %s117
      %p121 = pneg %p115
      %p122 = scmp.eq.s32.totalorder %s28, 1
      %p123 = por %p121, %p122
      %p124 = scmp.ne.s32.totalorder %s116, %s119
      %p125 = scmp.eq.s32.totalorder %s28, 0
      %p126 = por %p124, %p125
      %p127 = scmp.ne.s32.totalorder %s116, %s119
      %p128 = scmp.eq.s32.totalorder %s33, 1
      %p129 = por %p127, %p128
      %p130 = scmp.ne.s32.totalorder %s119, %s120
      %p131 = scmp.eq.s32.totalorder %s33, 0
      %p132 = por %p130, %p131
      %p133 = scmp.ne.s32.totalorder %s119, %s120
      %p134 = scmp.eq.s32.totalorder %s34, 1
      %p135 = por %p133, %p134
      %p137 = scmp.ne.s32.totalorder %s120, %s136
      %p138 = scmp.eq.s32.totalorder %s34, 0
      %p139 = por %p137, %p138
      %s140 = ssub.s32 %s28, %s35
      %p141 = scmp.eq.s32.totalorder %s140, 0
      %s143 = sadd.s32 %s142, 1
      %s144 = scalar_select %p141, %s142, %s143
      %p147 = pneg %p141
      %p148 = scmp.eq.s32.totalorder %s28, 1
      %p149 = por %p147, %p148
      %p150 = scmp.ne.s32.totalorder %s142, %s145
      %p151 = scmp.eq.s32.totalorder %s28, 0
      %p152 = por %p150, %p151
      %p153 = scmp.ne.s32.totalorder %s142, %s145
      %p154 = scmp.eq.s32.totalorder %s33, 1
      %p155 = por %p153, %p154
      %p156 = scmp.ne.s32.totalorder %s145, %s146
      %p157 = scmp.eq.s32.totalorder %s33, 0
      %p158 = por %p156, %p157
      %p159 = scmp.ne.s32.totalorder %s145, %s146
      %p160 = scmp.eq.s32.totalorder %s34, 1
      %p161 = por %p159, %p160
      %p163 = scmp.ne.s32.totalorder %s146, %s162
      %p164 = scmp.eq.s32.totalorder %s34, 0
      %p165 = por %p163, %p164
      %s166 = ssub.s32 %s28, %s35
      %p167 = scmp.eq.s32.totalorder %s166, 0
      %s169 = sadd.s32 %s168, 1
      %s170 = scalar_select %p167, %s168, %s169
      %p173 = pneg %p167
      %p174 = scmp.eq.s32.totalorder %s28, 1
      %p175 = por %p173, %p174
      %p176 = scmp.ne.s32.totalorder %s168, %s171
      %p177 = scmp.eq.s32.totalorder %s28, 0
      %p178 = por %p176, %p177
      %p179 = scmp.ne.s32.totalorder %s168, %s171
      %p180 = scmp.eq.s32.totalorder %s33, 1
      %p181 = por %p179, %p180
      %p182 = scmp.ne.s32.totalorder %s171, %s172
      %p183 = scmp.eq.s32.totalorder %s33, 0
      %p184 = por %p182, %p183
      %p185 = scmp.ne.s32.totalorder %s171, %s172
      %p186 = scmp.eq.s32.totalorder %s34, 1
      %p187 = por %p185, %p186
      %p189 = scmp.ne.s32.totalorder %s172, %s188
      %p190 = scmp.eq.s32.totalorder %s34, 0
      %p191 = por %p189, %p190
      %s192 = ssub.s32 %s28, %s35
      %p193 = scmp.eq.s32.totalorder %s192, 0
      %s195 = sadd.s32 %s194, 1
      %s196 = scalar_select %p193, %s194, %s195
      %p199 = pneg %p193
      %p200 = scmp.eq.s32.totalorder %s28, 1
      %p201 = por %p199, %p200
      %p202 = scmp.ne.s32.totalorder %s194, %s197
      %p203 = scmp.eq.s32.totalorder %s28, 0
      %p204 = por %p202, %p203
      %p205 = scmp.ne.s32.totalorder %s194, %s197
      %p206 = scmp.eq.s32.totalorder %s33, 1
      %p207 = por %p205, %p206
      %p208 = scmp.ne.s32.totalorder %s197, %s198
      %p209 = scmp.eq.s32.totalorder %s33, 0
      %p210 = por %p208, %p209
      %p211 = scmp.ne.s32.totalorder %s197, %s198
      %p212 = scmp.eq.s32.totalorder %s34, 1
      %p213 = por %p211, %p212
      %p215 = scmp.ne.s32.totalorder %s198, %s214
      %p216 = scmp.eq.s32.totalorder %s34, 0
      %p217 = por %p215, %p216
      %s218 = ssub.s32 %s28, %s35
      %p219 = scmp.eq.s32.totalorder %s218, 0
      %s221 = sadd.s32 %s220, 1
      %s222 = scalar_select %p219, %s220, %s221
      %p225 = pneg %p219
      %p226 = scmp.eq.s32.totalorder %s28, 1
      %p227 = por %p225, %p226
      %p228 = scmp.ne.s32.totalorder %s220, %s223
      %p229 = scmp.eq.s32.totalorder %s28, 0
      %p230 = por %p228, %p229
      %p231 = scmp.ne.s32.totalorder %s220, %s223
      %p232 = scmp.eq.s32.totalorder %s33, 1
      %p233 = por %p231, %p232
      %p234 = scmp.ne.s32.totalorder %s223, %s224
      %p235 = scmp.eq.s32.totalorder %s33, 0
      %p236 = por %p234, %p235
      %p237 = scmp.ne.s32.totalorder %s223, %s224
      %p238 = scmp.eq.s32.totalorder %s34, 1
      %p239 = por %p237, %p238
      %p241 = scmp.ne.s32.totalorder %s224, %s240
      %p242 = scmp.eq.s32.totalorder %s34, 0
      %p243 = por %p241, %p242
      %s244 = ssub.s32 %s28, %s35
      %p245 = scmp.eq.s32.totalorder %s244, 0
      %s247 = sadd.s32 %s246, 1
      %s248 = scalar_select %p245, %s246, %s247
      %p251 = pneg %p245
      %p252 = scmp.eq.s32.totalorder %s28, 1
      %p253 = por %p251, %p252
      %p254 = scmp.ne.s32.totalorder %s246, %s249
      %p255 = scmp.eq.s32.totalorder %s28, 0
      %p256 = por %p254, %p255
      %p257 = scmp.ne.s32.totalorder %s246, %s249
      %p258 = scmp.eq.s32.totalorder %s33, 1
      %p259 = por %p257, %p258
      %p260 = scmp.ne.s32.totalorder %s249, %s250
      %p261 = scmp.eq.s32.totalorder %s33, 0
      %p262 = por %p260, %p261
      %p263 = scmp.ne.s32.totalorder %s249, %s250
      %p264 = scmp.eq.s32.totalorder %s34, 1
      %p265 = por %p263, %p264
      %p267 = scmp.ne.s32.totalorder %s250, %s266
      %p268 = scmp.eq.s32.totalorder %s34, 0
      %p269 = por %p267, %p268
      %s270 = ssub.s32 %s28, %s35
      %p271 = scmp.eq.s32.totalorder %s270, 0
      %s273 = sadd.s32 %s272, 1
      %s274 = scalar_select %p271, %s272, %s273
      %p277 = pneg %p271
      %p278 = scmp.eq.s32.totalorder %s28, 1
      %p279 = por %p277, %p278
      %p280 = scmp.ne.s32.totalorder %s272, %s275
      %p281 = scmp.eq.s32.totalorder %s28, 0
      %p282 = por %p280, %p281
      %p283 = scmp.ne.s32.totalorder %s272, %s275
      %p284 = scmp.eq.s32.totalorder %s33, 1
      %p285 = por %p283, %p284
      %p286 = scmp.ne.s32.totalorder %s275, %s276
      %p287 = scmp.eq.s32.totalorder %s33, 0
      %p288 = por %p286, %p287
      %p289 = scmp.ne.s32.totalorder %s275, %s276
      %p290 = scmp.eq.s32.totalorder %s34, 1
      %p291 = por %p289, %p290
      %p293 = scmp.ne.s32.totalorder %s276, %s292
      %p294 = scmp.eq.s32.totalorder %s34, 0
      %p295 = por %p293, %p294
      %s296 = ssub.s32 %s28, %s35
      %p297 = scmp.eq.s32.totalorder %s296, 0
      %s299 = sadd.s32 %s298, 1
      %s300 = scalar_select %p297, %s298, %s299
      %p303 = pneg %p297
      %p304 = scmp.eq.s32.totalorder %s28, 1
      %p305 = por %p303, %p304
      %p306 = scmp.ne.s32.totalorder %s298, %s301
      %p307 = scmp.eq.s32.totalorder %s28, 0
      %p308 = por %p306, %p307
      %p309 = scmp.ne.s32.totalorder %s298, %s301
      %p310 = scmp.eq.s32.totalorder %s33, 1
      %p311 = por %p309, %p310
      %p312 = scmp.ne.s32.totalorder %s301, %s302
      %p313 = scmp.eq.s32.totalorder %s33, 0
      %p314 = por %p312, %p313
      %p315 = scmp.ne.s32.totalorder %s301, %s302
      %p316 = scmp.eq.s32.totalorder %s34, 1
      %p317 = por %p315, %p316
      %p319 = scmp.ne.s32.totalorder %s302, %s318
      %p320 = scmp.eq.s32.totalorder %s34, 0
      %p321 = por %p319, %p320
      %s322 = ssub.s32 %s28, %s35
      %p323 = scmp.eq.s32.totalorder %s322, 0
      %s325 = sadd.s32 %s324, 1
      %s326 = scalar_select %p323, %s324, %s325
      %p329 = pneg %p323
      %p330 = scmp.eq.s32.totalorder %s28, 1
      %p331 = por %p329, %p330
      %p332 = scmp.ne.s32.totalorder %s324, %s327
      %p333 = scmp.eq.s32.totalorder %s28, 0
      %p334 = por %p332, %p333
      %p335 = scmp.ne.s32.totalorder %s324, %s327
      %p336 = scmp.eq.s32.totalorder %s33, 1
      %p337 = por %p335, %p336
      %p338 = scmp.ne.s32.totalorder %s327, %s328
      %p339 = scmp.eq.s32.totalorder %s33, 0
      %p340 = por %p338, %p339
      %p341 = scmp.ne.s32.totalorder %s327, %s328
      %p342 = scmp.eq.s32.totalorder %s34, 1
      %p343 = por %p341, %p342
      %p345 = scmp.ne.s32.totalorder %s328, %s344
      %p346 = scmp.eq.s32.totalorder %s34, 0
      %p347 = por %p345, %p346
      %s348 = ssub.s32 %s28, %s35
      %p349 = scmp.eq.s32.totalorder %s348, 0
      %s351 = sadd.s32 %s350, 1
      %s352 = scalar_select %p349, %s350, %s351
      %p355 = pneg %p349
      %p356 = scmp.eq.s32.totalorder %s28, 1
      %p357 = por %p355, %p356
      %p358 = scmp.ne.s32.totalorder %s350, %s353
      %p359 = scmp.eq.s32.totalorder %s28, 0
      %p360 = por %p358, %p359
      %p361 = scmp.ne.s32.totalorder %s350, %s353
      %p362 = scmp.eq.s32.totalorder %s33, 1
      %p363 = por %p361, %p362
      %p364 = scmp.ne.s32.totalorder %s353, %s354
      %p365 = scmp.eq.s32.totalorder %s33, 0
      %p366 = por %p364, %p365
      %p367 = scmp.ne.s32.totalorder %s353, %s354
      %p368 = scmp.eq.s32.totalorder %s34, 1
      %p369 = por %p367, %p368
      %p371 = scmp.ne.s32.totalorder %s354, %s370
      %p372 = scmp.eq.s32.totalorder %s34, 0
      %p373 = por %p371, %p372
      %s374 = ssub.s32 %s28, %s35
      %p375 = scmp.eq.s32.totalorder %s374, 0
      %s377 = sadd.s32 %s376, 1
      %s378 = scalar_select %p375, %s376, %s377
      %p381 = pneg %p375
      %p382 = scmp.eq.s32.totalorder %s28, 1
      %p383 = por %p381, %p382
      %p384 = scmp.ne.s32.totalorder %s376, %s379
      %p385 = scmp.eq.s32.totalorder %s28, 0
      %p386 = por %p384, %p385
      %p387 = scmp.ne.s32.totalorder %s376, %s379
      %p388 = scmp.eq.s32.totalorder %s33, 1
      %p389 = por %p387, %p388
      %p390 = scmp.ne.s32.totalorder %s379, %s380
      %p391 = scmp.eq.s32.totalorder %s33, 0
      %p392 = por %p390, %p391
      %p393 = scmp.ne.s32.totalorder %s379, %s380
      %p394 = scmp.eq.s32.totalorder %s34, 1
      %p395 = por %p393, %p394
      %p397 = scmp.ne.s32.totalorder %s380, %s396
      %p398 = scmp.eq.s32.totalorder %s34, 0
      %p399 = por %p397, %p398
      %s400 = ssub.s32 %s28, %s35
      %p401 = scmp.eq.s32.totalorder %s400, 0
      %s403 = sadd.s32 %s402, 1
      %s404 = scalar_select %p401, %s402, %s403
      %p407 = pneg %p401
      %p408 = scmp.eq.s32.totalorder %s28, 1
      %p409 = por %p407, %p408
      %p410 = scmp.ne.s32.totalorder %s402, %s405
      %p411 = scmp.eq.s32.totalorder %s28, 0
      %p412 = por %p410, %p411
      %p413 = scmp.ne.s32.totalorder %s402, %s405
      %p414 = scmp.eq.s32.totalorder %s33, 1
      %p415 = por %p413, %p414
      %p416 = scmp.ne.s32.totalorder %s405, %s406
      %p417 = scmp.eq.s32.totalorder %s33, 0
      %p418 = por %p416, %p417
      %p419 = scmp.ne.s32.totalorder %s405, %s406
      %p420 = scmp.eq.s32.totalorder %s34, 1
      %p421 = por %p419, %p420
      %p423 = scmp.ne.s32.totalorder %s406, %s422
      %p424 = scmp.eq.s32.totalorder %s34, 0
      %p425 = por %p423, %p424
      %s426 = ssub.s32 %s28, %s35
      %p427 = scmp.eq.s32.totalorder %s426, 0
      %s429 = sadd.s32 %s428, 1
      %s430 = scalar_select %p427, %s428, %s429
      %p433 = pneg %p427
      %p434 = scmp.eq.s32.totalorder %s28, 1
      %p435 = por %p433, %p434
      %p436 = scmp.ne.s32.totalorder %s428, %s431
      %p437 = scmp.eq.s32.totalorder %s28, 0
      %p438 = por %p436, %p437
      %p439 = scmp.ne.s32.totalorder %s428, %s431
      %p440 = scmp.eq.s32.totalorder %s33, 1
      %p441 = por %p439, %p440
      %p442 = scmp.ne.s32.totalorder %s431, %s432
      %p443 = scmp.eq.s32.totalorder %s33, 0
      %p444 = por %p442, %p443
      %p445 = scmp.ne.s32.totalorder %s431, %s432
      %p446 = scmp.eq.s32.totalorder %s34, 1
      %p447 = por %p445, %p446
      %p449 = scmp.ne.s32.totalorder %s432, %s448
      %p450 = scmp.eq.s32.totalorder %s34, 0
      %p451 = por %p449, %p450
      %s452 = ssub.s32 %s28, %s35
      %p453 = scmp.eq.s32.totalorder %s452, 0
      %s455 = sadd.s32 %s454, 1
      %s456 = scalar_select %p453, %s454, %s455
      %p459 = pneg %p453
      %p460 = scmp.eq.s32.totalorder %s28, 1
      %p461 = por %p459, %p460
      %p462 = scmp.ne.s32.totalorder %s454, %s457
      %p463 = scmp.eq.s32.totalorder %s28, 0
      %p464 = por %p462, %p463
      %p465 = scmp.ne.s32.totalorder %s454, %s457
      %p466 = scmp.eq.s32.totalorder %s33, 1
      %p467 = por %p465, %p466
      %p468 = scmp.ne.s32.totalorder %s457, %s458
      %p469 = scmp.eq.s32.totalorder %s33, 0
      %p470 = por %p468, %p469
      %p471 = scmp.ne.s32.totalorder %s457, %s458
      %p472 = scmp.eq.s32.totalorder %s34, 1
      %p473 = por %p471, %p472
      %p475 = scmp.ne.s32.totalorder %s458, %s474
      %p476 = scmp.eq.s32.totalorder %s34, 0
      %p477 = por %p475, %p476
      %s478 = ssub.s32 %s28, %s35
      %p479 = scmp.eq.s32.totalorder %s478, 0
      %s481 = sadd.s32 %s480, 1
      %s482 = scalar_select %p479, %s480, %s481
      %p485 = pneg %p479
      %p486 = scmp.eq.s32.totalorder %s28, 1
      %p487 = por %p485, %p486
      %p488 = scmp.ne.s32.totalorder %s480, %s483
      %p489 = scmp.eq.s32.totalorder %s28, 0
      %p490 = por %p488, %p489
      %p491 = scmp.ne.s32.totalorder %s480, %s483
      %p492 = scmp.eq.s32.totalorder %s33, 1
      %p493 = por %p491, %p492
      %p494 = scmp.ne.s32.totalorder %s483, %s484
      %p495 = scmp.eq.s32.totalorder %s33, 0
      %p496 = por %p494, %p495
      %p497 = scmp.ne.s32.totalorder %s483, %s484
      %p498 = scmp.eq.s32.totalorder %s34, 1
      %p499 = por %p497, %p498
      %p501 = scmp.ne.s32.totalorder %s484, %s500
      %p502 = scmp.eq.s32.totalorder %s34, 0
      %p503 = por %p501, %p502
      %s504 = ssub.s32 %s28, %s35
      %p505 = scmp.eq.s32.totalorder %s504, 0
      %s507 = sadd.s32 %s506, 1
      %s508 = scalar_select %p505, %s506, %s507
      %p511 = pneg %p505
      %p512 = scmp.eq.s32.totalorder %s28, 1
      %p513 = por %p511, %p512
      %p514 = scmp.ne.s32.totalorder %s506, %s509
      %p515 = scmp.eq.s32.totalorder %s28, 0
      %p516 = por %p514, %p515
      %p517 = scmp.ne.s32.totalorder %s506, %s509
      %p518 = scmp.eq.s32.totalorder %s33, 1
      %p519 = por %p517, %p518
      %p520 = scmp.ne.s32.totalorder %s509, %s510
      %p521 = scmp.eq.s32.totalorder %s33, 0
      %p522 = por %p520, %p521
      %p523 = scmp.ne.s32.totalorder %s509, %s510
      %p524 = scmp.eq.s32.totalorder %s34, 1
      %p525 = por %p523, %p524
      %p527 = scmp.ne.s32.totalorder %s510, %s526
      %p528 = scmp.eq.s32.totalorder %s34, 0
      %p529 = por %p527, %p528
      %p530 = scmp.le.s32.totalorder 1, %s28
      %p531 = scmp.lt.s32.totalorder %s28, 3
      %p532 = pnand %p530, %p531
      %p533 = pneg %p532
      // Predicated region
      $region9: #{tpu_custom_call.1} parent=5 // pred_check
        _
      $region10: #{tpu_custom_call.1} parent=5 // pred_check_branch
        %535 = sbr.rel (%p532) target = $region12
      $region11: #{tpu_custom_call.1} parent=5 // pred_region
        %s536 = ssub.s32 %s28, 1
      $region12: #{tpu_custom_call.1} parent=5 // pred_fallthru
        _
      %p537 = scmp.lt.s32.totalorder %s28, 2
      // Predicated region
      $region13: #{tpu_custom_call.1} parent=5 // pred_check
        %p538 = pneg %p537
      $region14: #{tpu_custom_call.1} parent=5 // pred_check_branch
        %540 = sbr.rel (%p538) target = $region16
      $region15: #{tpu_custom_call.1} parent=5 // pred_region
        // Predicated region
        $region17: #{tpu_custom_call.1} parent=15 // pred_check
          %p541 = pneg %p48
        $region18: #{tpu_custom_call.1} parent=15 // pred_check_branch
          %543 = sbr.rel (%p541) target = $region20
        $region19: #{tpu_custom_call.1} parent=15 // pred_region
          %p544 = scmp.lt.s32.totalorder %s28, 1
          %s545 = scalar_select %p544, %s28, 1
          %s546 = smul.addr %s545, 2
          %s547 = smul.addr %s546, 8
          %s548 = scalar_lea.vmem %s0, %s547
        $region20: #{tpu_custom_call.1} parent=15 // pred_fallthru
          _
        // Predicated region
        $region21: #{tpu_custom_call.1} parent=15 // pred_check
          %p549 = pneg %p74
        $region22: #{tpu_custom_call.1} parent=15 // pred_check_branch
          %551 = sbr.rel (%p549) target = $region24
        $region23: #{tpu_custom_call.1} parent=15 // pred_region
          %p552 = scmp.lt.s32.totalorder %s28, 1
          %s553 = scalar_select %p552, %s28, 1
          %s554 = smul.addr %s553, 2
          %s555 = smul.addr %s554, 4
          %s556 = scalar_lea.vmem %s1, %s555
        $region24: #{tpu_custom_call.1} parent=15 // pred_fallthru
          _
        // Predicated region
        $region25: #{tpu_custom_call.1} parent=15 // pred_check
          %p557 = pneg %p100
        $region26: #{tpu_custom_call.1} parent=15 // pred_check_branch
          %559 = sbr.rel (%p557) target = $region28
        $region27: #{tpu_custom_call.1} parent=15 // pred_region
          %p560 = scmp.lt.s32.totalorder %s28, 1
          %s561 = scalar_select %p560, %s28, 1
          %s562 = scalar_lea.vmem %s2, %s561
        $region28: #{tpu_custom_call.1} parent=15 // pred_fallthru
          _
        // Predicated region
        $region29: #{tpu_custom_call.1} parent=15 // pred_check
          %p563 = pneg %p126
        $region30: #{tpu_custom_call.1} parent=15 // pred_check_branch
          %565 = sbr.rel (%p563) target = $region32
        $region31: #{tpu_custom_call.1} parent=15 // pred_region
          %p566 = scmp.lt.s32.totalorder %s28, 1
          %s567 = scalar_select %p566, %s28, 1
          %s568 = smul.addr %s567, 4
          %s569 = smul.addr %s568, 4
          %s570 = scalar_lea.vmem %s3, %s569
        $region32: #{tpu_custom_call.1} parent=15 // pred_fallthru
          _
        // Predicated region
        $region33: #{tpu_custom_call.1} parent=15 // pred_check
          %p571 = pneg %p152
        $region34: #{tpu_custom_call.1} parent=15 // pred_check_branch
          %573 = sbr.rel (%p571) target = $region36
        $region35: #{tpu_custom_call.1} parent=15 // pred_region
          %p574 = scmp.lt.s32.totalorder %s28, 1
          %s575 = scalar_select %p574, %s28, 1
          %s576 = scalar_lea.vmem %s4, %s575
        $region36: #{tpu_custom_call.1} parent=15 // pred_fallthru
          _
        // Predicated region
        $region37: #{tpu_custom_call.1} parent=15 // pred_check
          %p577 = pneg %p178
        $region38: #{tpu_custom_call.1} parent=15 // pred_check_branch
          %579 = sbr.rel (%p577) target = $region40
        $region39: #{tpu_custom_call.1} parent=15 // pred_region
          %p580 = scmp.lt.s32.totalorder %s28, 1
          %s581 = scalar_select %p580, %s28, 1
          %s582 = smul.addr %s581, 4
          %s583 = smul.addr %s582, 4
          %s584 = scalar_lea.vmem %s5, %s583
        $region40: #{tpu_custom_call.1} parent=15 // pred_fallthru
          _
        // Predicated region
        $region41: #{tpu_custom_call.1} parent=15 // pred_check
          %p585 = pneg %p204
        $region42: #{tpu_custom_call.1} parent=15 // pred_check_branch
          %587 = sbr.rel (%p585) target = $region44
        $region43: #{tpu_custom_call.1} parent=15 // pred_region
          %p588 = scmp.lt.s32.totalorder %s28, 1
          %s589 = scalar_select %p588, %s28, 1
          %s590 = scalar_lea.vmem %s6, %s589
        $region44: #{tpu_custom_call.1} parent=15 // pred_fallthru
          _
        // Predicated region
        $region45: #{tpu_custom_call.1} parent=15 // pred_check
          %p591 = pneg %p230
        $region46: #{tpu_custom_call.1} parent=15 // pred_check_branch
          %593 = sbr.rel (%p591) target = $region48
        $region47: #{tpu_custom_call.1} parent=15 // pred_region
          %p594 = scmp.lt.s32.totalorder %s28, 1
          %s595 = scalar_select %p594, %s28, 1
          %s596 = scalar_lea.vmem %s7, %s595
        $region48: #{tpu_custom_call.1} parent=15 // pred_fallthru
          _
        // Predicated region
        $region49: #{tpu_custom_call.1} parent=15 // pred_check
          %p597 = pneg %p256
        $region50: #{tpu_custom_call.1} parent=15 // pred_check_branch
          %599 = sbr.rel (%p597) target = $region52
        $region51: #{tpu_custom_call.1} parent=15 // pred_region
          %p600 = scmp.lt.s32.totalorder %s28, 1
          %s601 = scalar_select %p600, %s28, 1
          %s602 = scalar_lea.vmem %s8, %s601
        $region52: #{tpu_custom_call.1} parent=15 // pred_fallthru
          _
        // Predicated region
        $region53: #{tpu_custom_call.1} parent=15 // pred_check
          %p603 = pneg %p282
        $region54: #{tpu_custom_call.1} parent=15 // pred_check_branch
          %605 = sbr.rel (%p603) target = $region56
        $region55: #{tpu_custom_call.1} parent=15 // pred_region
          %p606 = scmp.lt.s32.totalorder %s28, 1
          %s607 = scalar_select %p606, %s28, 1
          %s608 = smul.addr %s607, 4
          %s609 = smul.addr %s608, 4
          %s610 = scalar_lea.vmem %s9, %s609
        $region56: #{tpu_custom_call.1} parent=15 // pred_fallthru
          _
        // Predicated region
        $region57: #{tpu_custom_call.1} parent=15 // pred_check
          %p611 = pneg %p308
        $region58: #{tpu_custom_call.1} parent=15 // pred_check_branch
          %613 = sbr.rel (%p611) target = $region60
        $region59: #{tpu_custom_call.1} parent=15 // pred_region
          %p614 = scmp.lt.s32.totalorder %s28, 1
          %s615 = scalar_select %p614, %s28, 1
          %s616 = scalar_lea.vmem %s10, %s615
        $region60: #{tpu_custom_call.1} parent=15 // pred_fallthru
          _
        // Predicated region
        $region61: #{tpu_custom_call.1} parent=15 // pred_check
          %p617 = pneg %p334
        $region62: #{tpu_custom_call.1} parent=15 // pred_check_branch
          %619 = sbr.rel (%p617) target = $region64
        $region63: #{tpu_custom_call.1} parent=15 // pred_region
          %p620 = scmp.lt.s32.totalorder %s28, 1
          %s621 = scalar_select %p620, %s28, 1
          %s622 = smul.addr %s621, 8
          %s623 = smul.addr %s622, 4
          %s624 = scalar_lea.vmem %s11, %s623
        $region64: #{tpu_custom_call.1} parent=15 // pred_fallthru
          _
        // Predicated region
        $region65: #{tpu_custom_call.1} parent=15 // pred_check
          %p625 = pneg %p360
        $region66: #{tpu_custom_call.1} parent=15 // pred_check_branch
          %627 = sbr.rel (%p625) target = $region68
        $region67: #{tpu_custom_call.1} parent=15 // pred_region
          %p628 = scmp.lt.s32.totalorder %s28, 1
          %s629 = scalar_select %p628, %s28, 1
          %s630 = scalar_lea.vmem %s12, %s629
        $region68: #{tpu_custom_call.1} parent=15 // pred_fallthru
          _
        // Predicated region
        $region69: #{tpu_custom_call.1} parent=15 // pred_check
          %p631 = pneg %p386
        $region70: #{tpu_custom_call.1} parent=15 // pred_check_branch
          %633 = sbr.rel (%p631) target = $region72
        $region71: #{tpu_custom_call.1} parent=15 // pred_region
          %p634 = scmp.lt.s32.totalorder %s28, 1
          %s635 = scalar_select %p634, %s28, 1
          %s636 = scalar_lea.vmem %s13, %s635
        $region72: #{tpu_custom_call.1} parent=15 // pred_fallthru
          _
        // Predicated region
        $region73: #{tpu_custom_call.1} parent=15 // pred_check
          %p637 = pneg %p412
        $region74: #{tpu_custom_call.1} parent=15 // pred_check_branch
          %639 = sbr.rel (%p637) target = $region76
        $region75: #{tpu_custom_call.1} parent=15 // pred_region
          %p640 = scmp.lt.s32.totalorder %s28, 1
          %s641 = scalar_select %p640, %s28, 1
          %s642 = scalar_lea.vmem %s14, %s641
        $region76: #{tpu_custom_call.1} parent=15 // pred_fallthru
          _
        // Predicated region
        $region77: #{tpu_custom_call.1} parent=15 // pred_check
          %p643 = pneg %p438
        $region78: #{tpu_custom_call.1} parent=15 // pred_check_branch
          %645 = sbr.rel (%p643) target = $region80
        $region79: #{tpu_custom_call.1} parent=15 // pred_region
          %p646 = scmp.lt.s32.totalorder %s28, 1
          %s647 = scalar_select %p646, %s28, 1
          %s648 = scalar_lea.vmem %s15, %s647
        $region80: #{tpu_custom_call.1} parent=15 // pred_fallthru
          _
        // Predicated region
        $region81: #{tpu_custom_call.1} parent=15 // pred_check
          %p649 = pneg %p464
        $region82: #{tpu_custom_call.1} parent=15 // pred_check_branch
          %651 = sbr.rel (%p649) target = $region84
        $region83: #{tpu_custom_call.1} parent=15 // pred_region
          %p652 = scmp.lt.s32.totalorder %s28, 1
          %s653 = scalar_select %p652, %s28, 1
          %s654 = scalar_lea.vmem %s16, %s653
        $region84: #{tpu_custom_call.1} parent=15 // pred_fallthru
          _
      $region16: #{tpu_custom_call.1} parent=5 // pred_fallthru
        _
      %p655 = scmp.le.s32.totalorder 1, %s28
      %p656 = scmp.lt.s32.totalorder %s28, 3
      %p657 = pnand %p655, %p656
      %p658 = pneg %p657
      // Predicated region
      $region85: #{tpu_custom_call.1} parent=5 // pred_check
        _
      $region86: #{tpu_custom_call.1} parent=5 // pred_check_branch
        %660 = sbr.rel (%p657) target = $region88
      $region87: #{tpu_custom_call.1} parent=5 // pred_region
        %s661 = ssub.s32 %s28, 1
        %p662 = scmp.lt.s32.totalorder %s33, 1
        %s663 = scalar_select %p662, %s33, 1
        %s664 = smul.addr %s663, 2
        %s665 = smul.addr %s664, 8
        %s666 = scalar_lea.vmem %s0, %s665
        %p667 = pneg %p54
        %p668 = pneg %p51
        %p669 = scmp.lt.s32.totalorder %s33, 1
        %s670 = scalar_select %p669, %s33, 1
        %s671 = smul.addr %s670, 2
        %s672 = smul.addr %s671, 4
        %s673 = scalar_lea.vmem %s1, %s672
        %p674 = pneg %p80
        %p675 = pneg %p77
        %p676 = scmp.lt.s32.totalorder %s33, 1
        %s677 = scalar_select %p676, %s33, 1
        %s678 = scalar_lea.vmem %s2, %s677
        %p679 = pneg %p106
        %p680 = pneg %p103
        %p681 = scmp.lt.s32.totalorder %s33, 1
        %s682 = scalar_select %p681, %s33, 1
        %s683 = smul.addr %s682, 4
        %s684 = smul.addr %s683, 4
        %s685 = scalar_lea.vmem %s3, %s684
        %p686 = pneg %p132
        %p687 = pneg %p129
        %p688 = scmp.lt.s32.totalorder %s33, 1
        %s689 = scalar_select %p688, %s33, 1
        %s690 = scalar_lea.vmem %s4, %s689
        %p691 = pneg %p158
        %p692 = pneg %p155
        %p693 = scmp.lt.s32.totalorder %s33, 1
        %s694 = scalar_select %p693, %s33, 1
        %s695 = smul.addr %s694, 4
        %s696 = smul.addr %s695, 4
        %s697 = scalar_lea.vmem %s5, %s696
        %p698 = pneg %p184
        %p699 = pneg %p181
        %p700 = scmp.lt.s32.totalorder %s33, 1
        %s701 = scalar_select %p700, %s33, 1
        %s702 = scalar_lea.vmem %s6, %s701
        %p703 = pneg %p210
        %p704 = pneg %p207
        %p705 = scmp.lt.s32.totalorder %s33, 1
        %s706 = scalar_select %p705, %s33, 1
        %s707 = scalar_lea.vmem %s7, %s706
        %p708 = pneg %p236
        %p709 = pneg %p233
        %p710 = scmp.lt.s32.totalorder %s33, 1
        %s711 = scalar_select %p710, %s33, 1
        %s712 = scalar_lea.vmem %s8, %s711
        %p713 = pneg %p262
        %p714 = pneg %p259
        %p715 = scmp.lt.s32.totalorder %s33, 1
        %s716 = scalar_select %p715, %s33, 1
        %s717 = smul.addr %s716, 4
        %s718 = smul.addr %s717, 4
        %s719 = scalar_lea.vmem %s9, %s718
        %p720 = pneg %p288
        %p721 = pneg %p285
        %p722 = scmp.lt.s32.totalorder %s33, 1
        %s723 = scalar_select %p722, %s33, 1
        %s724 = scalar_lea.vmem %s10, %s723
        %p725 = pneg %p314
        %p726 = pneg %p311
        %p727 = scmp.lt.s32.totalorder %s33, 1
        %s728 = scalar_select %p727, %s33, 1
        %s729 = smul.addr %s728, 8
        %s730 = smul.addr %s729, 4
        %s731 = scalar_lea.vmem %s11, %s730
        %p732 = pneg %p340
        %p733 = pneg %p337
        %p734 = scmp.lt.s32.totalorder %s33, 1
        %s735 = scalar_select %p734, %s33, 1
        %s736 = scalar_lea.vmem %s12, %s735
        %p737 = pneg %p366
        %p738 = pneg %p363
        %p739 = scmp.lt.s32.totalorder %s33, 1
        %s740 = scalar_select %p739, %s33, 1
        %s741 = scalar_lea.vmem %s13, %s740
        %p742 = pneg %p392
        %p743 = pneg %p389
        %p744 = scmp.lt.s32.totalorder %s33, 1
        %s745 = scalar_select %p744, %s33, 1
        %s746 = scalar_lea.vmem %s14, %s745
        %p747 = pneg %p418
        %p748 = pneg %p415
        %p749 = scmp.lt.s32.totalorder %s33, 1
        %s750 = scalar_select %p749, %s33, 1
        %s751 = scalar_lea.vmem %s15, %s750
        %p752 = pneg %p444
        %p753 = pneg %p441
        %p754 = scmp.lt.s32.totalorder %s33, 1
        %s755 = scalar_select %p754, %s33, 1
        %s756 = scalar_lea.vmem %s16, %s755
        %p757 = pneg %p470
        %p758 = pneg %p467
        %p759 = pneg %p496
        %p760 = pneg %p493
        %p761 = scmp.lt.s32.totalorder %s33, 1
        %s762 = scalar_select %p761, %s33, 1
        %s763 = smul.addr %s762, 2
        %s764 = smul.addr %s763, 8
        %s765 = scalar_lea.vmem %s17, %s764
        %p766 = pneg %p522
        %p767 = pneg %p519
        %s768 = sand.u32 %s509, 1
        %s769 = scalar_lea.sflag [#allocation3], %s768
        %s770 = sand.u32 %s509, 1
        %s771 = smul.addr %s770, 4
        %s772 = scalar_lea.vmem [#allocation2], %s771
        %p773 = scmp.lt.s32.totalorder %s33, 1
        %s774 = scalar_select %p773, %s33, 1
        %s775 = smul.addr %s774, 2
        %s776 = smul.addr %s775, 8
        %s777 = scalar_lea.vmem %s0, %s776
        %p778 = scmp.lt.s32.totalorder %s33, 1
        %s779 = scalar_select %p778, %s33, 1
        %s780 = smul.addr %s779, 2
        %s781 = smul.addr %s780, 4
        %s782 = scalar_lea.vmem %s1, %s781
        %p783 = scmp.lt.s32.totalorder %s33, 1
        %s784 = scalar_select %p783, %s33, 1
        %s785 = scalar_lea.vmem %s2, %s784
        %p786 = scmp.lt.s32.totalorder %s33, 1
        %s787 = scalar_select %p786, %s33, 1
        %s788 = smul.addr %s787, 4
        %s789 = smul.addr %s788, 4
        %s790 = scalar_lea.vmem %s3, %s789
        %p791 = scmp.lt.s32.totalorder %s33, 1
        %s792 = scalar_select %p791, %s33, 1
        %s793 = scalar_lea.vmem %s4, %s792
        %p794 = scmp.lt.s32.totalorder %s33, 1
        %s795 = scalar_select %p794, %s33, 1
        %s796 = smul.addr %s795, 4
        %s797 = smul.addr %s796, 4
        %s798 = scalar_lea.vmem %s5, %s797
        %p799 = scmp.lt.s32.totalorder %s33, 1
        %s800 = scalar_select %p799, %s33, 1
        %s801 = scalar_lea.vmem %s6, %s800
        %p802 = scmp.lt.s32.totalorder %s33, 1
        %s803 = scalar_select %p802, %s33, 1
        %s804 = scalar_lea.vmem %s7, %s803
        %p805 = scmp.lt.s32.totalorder %s33, 1
        %s806 = scalar_select %p805, %s33, 1
        %s807 = scalar_lea.vmem %s8, %s806
        %p808 = scmp.lt.s32.totalorder %s33, 1
        %s809 = scalar_select %p808, %s33, 1
        %s810 = smul.addr %s809, 4
        %s811 = smul.addr %s810, 4
        %s812 = scalar_lea.vmem %s9, %s811
        %p813 = scmp.lt.s32.totalorder %s33, 1
        %s814 = scalar_select %p813, %s33, 1
        %s815 = scalar_lea.vmem %s10, %s814
        %p816 = scmp.lt.s32.totalorder %s33, 1
        %s817 = scalar_select %p816, %s33, 1
        %s818 = smul.addr %s817, 8
        %s819 = smul.addr %s818, 4
        %s820 = scalar_lea.vmem %s11, %s819
        %p821 = scmp.lt.s32.totalorder %s33, 1
        %s822 = scalar_select %p821, %s33, 1
        %s823 = scalar_lea.vmem %s12, %s822
        %p824 = scmp.lt.s32.totalorder %s33, 1
        %s825 = scalar_select %p824, %s33, 1
        %s826 = scalar_lea.vmem %s13, %s825
        %p827 = scmp.lt.s32.totalorder %s33, 1
        %s828 = scalar_select %p827, %s33, 1
        %s829 = scalar_lea.vmem %s14, %s828
        %p830 = scmp.lt.s32.totalorder %s33, 1
        %s831 = scalar_select %p830, %s33, 1
        %s832 = scalar_lea.vmem %s15, %s831
        %p833 = scmp.lt.s32.totalorder %s33, 1
        %s834 = scalar_select %p833, %s33, 1
        %s835 = scalar_lea.vmem %s16, %s834
        %p836 = scmp.lt.s32.totalorder %s33, 1
        %s837 = scalar_select %p836, %s33, 1
        %s838 = smul.addr %s837, 2
        %s839 = smul.addr %s838, 8
        %s840 = scalar_lea.vmem %s17, %s839
        %v842 = vld [vmem:[%s777] sm:$0x7f]
        %v843 = vld [vmem:[%s777 + $0x8] sm:$0x7f]
        %vm844 = vcmask 129024
        %v845 = vsel %vm844, %v842, 0.0
        %846 = vadd.xlane.f32.xlu0 %v845
        %v847 = vpop.xlane.xlu0 %846
        %v848 = vsel %vm844, %v843, 0.0
        %849 = vadd.xlane.f32.xlu0 %v848
        %v850 = vpop.xlane.xlu0 %849
        %v851 = vrcp.pop 16.0
        %v852 = vmul.f32 16.0, %v851
        %v853 = vsub.f32 1.0, %v852
        %v854 = vmul.f32 %v851, %v853
        %v855 = vadd.f32 %v851, %v854
        %vm856 = vweird.f32 %v851
        %v857 = vsel %vm856, %v851, %v855
        %v858 = vmul.f32 %v847, %v857
        %v859 = vmul.f32 %v850, %v857
        %v860 = vsub.f32 %v842, %v858
        %v861 = vsub.f32 %v843, %v859
        %v862 = vmul.f32 %v860, %v860
        %v863 = vmul.f32 %v861, %v861
        %v864 = vsel %vm844, %v862, 0.0
        %865 = vadd.xlane.f32.xlu0 %v864
        %v866 = vpop.xlane.xlu0 %865
        %v867 = vsel %vm844, %v863, 0.0
        %868 = vadd.xlane.f32.xlu0 %v867
        %v869 = vpop.xlane.xlu0 %868
        %v870 = vmul.f32 %v866, %v857
        %v871 = vmul.f32 %v869, %v857
        %v872 = vadd.f32 %v870, 1e-05
        %v873 = vadd.f32 %v871, 1e-05
        %v874 = vrsqrt.pop %v872
        %v875 = vmul.f32 %v874, %v872
        %v876 = vmul.f32 %v875, %v874
        %v877 = vmul.f32 0.5, %v876
        %v878 = vsub.f32 1.5, %v877
        %v879 = vmul.f32 %v874, %v878
        %v880 = vmul.f32 %v872, %v879
        %vm881 = vcmp.eq.f32.partialorder %v872, inf
        %v882 = vsel %vm881, %v872, %v880
        %vm883 = vcmp.eq.f32.partialorder %v872, 0.0
        %v884 = vand.u32 %v872, 2147483648
        %v885 = vsel %vm883, %v884, %v882
        %v886 = vrsqrt.pop %v873
        %v887 = vmul.f32 %v886, %v873
        %v888 = vmul.f32 %v887, %v886
        %v889 = vmul.f32 0.5, %v888
        %v890 = vsub.f32 1.5, %v889
        %v891 = vmul.f32 %v886, %v890
        %v892 = vmul.f32 %v873, %v891
        %vm893 = vcmp.eq.f32.partialorder %v873, inf
        %v894 = vsel %vm893, %v873, %v892
        %vm895 = vcmp.eq.f32.partialorder %v873, 0.0
        %v896 = vand.u32 %v873, 2147483648
        %v897 = vsel %vm895, %v896, %v894
        %v898 = vlaneseq
        %v899 = vshrl.u32 %v898, 7
        %vm900 = vcmp.lt.s32.totalorder %v899, 4
        %v901 = vrcp.pop %v885
        %v902 = vmul.f32 %v885, %v901
        %v903 = vsub.f32 1.0, %v902
        %v904 = vmul.f32 %v901, %v903
        %v905 = vadd.f32 %v901, %v904
        %vm906 = vweird.f32 %v885
        %vm907 = vweird.f32 %v901
        %vm908 = vmor %vm906, %vm907
        %v909 = vsel %vm908, %v901, %v905
        %v910 = vand.u32 2147483647, %v885
        %vm911 = vcmp.eq.f32.partialorder %v910, 8.507059e+37
        %v912 = vand.u32 %v885, 2147483648
        %v913 = vor.u32 1.1754944e-38, %v912
        %v914 = vsel %vm911, %v913, %v909
        %v915 = vmul.f32 %v860, %v914
        %v916 = vrcp.pop %v897
        %v917 = vmul.f32 %v897, %v916
        %v918 = vsub.f32 1.0, %v917
        %v919 = vmul.f32 %v916, %v918
        %v920 = vadd.f32 %v916, %v919
        %vm921 = vweird.f32 %v897
        %vm922 = vweird.f32 %v916
        %vm923 = vmor %vm921, %vm922
        %v924 = vsel %vm923, %v916, %v920
        %v925 = vand.u32 2147483647, %v897
        %vm926 = vcmp.eq.f32.partialorder %v925, 8.507059e+37
        %v927 = vand.u32 %v897, 2147483648
        %v928 = vor.u32 1.1754944e-38, %v927
        %v929 = vsel %vm926, %v928, %v924
        %v930 = vmul.f32 %v861, %v929
        %v931 = vsel %vm900, %v915, %v842
        %v932 = vsel %vm900, %v930, %v843
        %v935 = vlaneseq
        %v936 = vand.u32 %v935, 127
        %v937 = vperm.slane %v858, %v936
        %v938 = vperm.slane %v859, %v936
        %v943 = vperm.slane %v885, %v936
        %v944 = vperm.slane %v897, %v936
        %vm947 = vcmask 1040384
        %v948 = vsel %vm947, %v937, %v943
        %v949 = vsel %vm947, %v938, %v944
        %vm950 = vcmask 25600
        %951 = vst.msk [vmem:[%s772] sm:$0x3] %vm950, %v948
        %952 = vst.msk [vmem:[%s772 + $0x2] sm:$0x3] %vm950, %v949
        %v954 = vrot.slane %v932, 1
        %vm956 = vcmask 1046528
        %v957 = vsel %vm956, %v931, %v954
        %v958 = vld [vmem:[%s782] sm:$0xf]
        %v959 = vld [vmem:[%s782 + $0x4] sm:$0xf]
        %v960 = vpack.c.bf16 %v954, %v957
        %v961 = vld [vmem:[%s785] sm:$0x1]
        %v963 = vperm.slane %v961, 0
        %v967 = vunpack.c.l.b16 %v958
        %v968 = vunpack.c.l.b16 %v959
        %v969 = vpack.c.b16 %v968, %v967
        %vm971 = vcmask 130048
        %v973 = vsel %vm971, %v960, 0
        %975 = vmatpush.bf16.msra.mxu0 0
        %976 = vmatpush.bf16.msra.mxu0 0
        %977 = vmatpush.bf16.msra.mxu0 0
        %978 = vmatpush.bf16.msra.mxu0 0
        %979 = vmatpush.bf16.msra.mxu0 0
        %980 = vmatpush.bf16.msra.mxu0 0
        %981 = vmatpush.bf16.msra.mxu0 0
        %982 = vmatpush.bf16.msra.mxu0 %v969
        %983 = vmatmul.bf16.gmra.mxu0 %v973
        %v984 = vpop.f32.mrf.mxu0
        %v985 = vadd.f32 %v963, %v984
        %v986 = vpop.f32.mrf.mxu0
        %v987 = vadd.f32 %v963, %v986
        %988 = vdwg.mxu0
        %v989 = vld [vmem:[%s790] sm:$0xf]
        %v990 = vld [vmem:[%s790 + $0x4] sm:$0xf]
        %v991 = vld [vmem:[%s790 + $0x8] sm:$0xf]
        %v992 = vld [vmem:[%s790 + $0xc] sm:$0xf]
        %v993 = vld [vmem:[%s793] sm:$0x1]
        %v994 = vld [vmem:[%s798] sm:$0xf]
        %v995 = vld [vmem:[%s798 + $0x4] sm:$0xf]
        %v996 = vld [vmem:[%s798 + $0x8] sm:$0xf]
        %v997 = vld [vmem:[%s798 + $0xc] sm:$0xf]
        %v998 = vld [vmem:[%s801] sm:$0x1]
        %v999 = vpack.c.bf16 %v987, %v985
        %v1001 = vperm.slane %v993, 0
        %v1007 = vunpack.c.l.b16 %v989
        %v1008 = vunpack.c.l.b16 %v990
        %v1009 = vunpack.c.l.b16 %v991
        %v1010 = vunpack.c.l.b16 %v992
        %v1011 = vpack.c.b16 %v1008, %v1007
        %v1012 = vpack.c.b16 %v1010, %v1009
        %vm1015 = vcmask 261120
        %v1017 = vsel %vm1015, %v999, 0
        %1019 = vmatpush.bf16.msra.mxu0 0
        %1020 = vmatpush.bf16.msra.mxu0 0
        %1021 = vmatpush.bf16.msra.mxu0 0
        %1022 = vmatpush.bf16.msra.mxu0 0
        %1023 = vmatpush.bf16.msra.mxu0 0
        %1024 = vmatpush.bf16.msra.mxu0 0
        %1025 = vmatpush.bf16.msra.mxu0 %v1012
        %1026 = vmatpush.bf16.msra.mxu0 %v1011
        %1027 = vmatmul.bf16.gmra.mxu0 %v1017
        %v1028 = vpop.f32.mrf.mxu0
        %v1029 = vadd.f32 %v1001, %v1028
        %v1030 = vpop.f32.mrf.mxu0
        %v1031 = vadd.f32 %v1001, %v1030
        %1032 = vdwg.mxu0
        %v1033 = vpack.c.bf16 %v1029, %v1029
        %1035 = vrot.lane.b32.xlu0 %v1033, 96
        %v1036 = vpop.permute.xlu0 %1035
        %vm1037 = vcmask 64512
        %v1039 = vsel %vm1037, %v1033, 0
        %v1042 = vsel %vm1037, %v1036, 0
        %1044 = vmatpush.bf16.xpose.msra.mxu0 0
        %1045 = vmatpush.bf16.xpose.msra.mxu0 0
        %1046 = vmatpush.bf16.xpose.msra.mxu0 0
        %1047 = vmatpush.bf16.xpose.msra.mxu0 0
        %1048 = vmatpush.bf16.xpose.msra.mxu0 0
        %1049 = vmatpush.bf16.xpose.msra.mxu0 0
        %1050 = vmatpush.bf16.xpose.msra.mxu0 0
        %1051 = vmatpush.bf16.xpose.msra.mxu0 %v1042
        %1052 = vmatmul.bf16.gmra.mxu0 %v1039
        %v1053 = vpop.f32.mrf.mxu0
        %v1054 = vadd.f32 0.0, %v1053
        %v1055 = vpop.f32.mrf.mxu0
        %1056 = vdwg.mxu0
        %vm1057 = vcmask 55296
        %v1058 = vsel %vm1057, %v1054, -inf
        %1059 = vmax.xlane.f32.xlu0 %v1058
        %v1060 = vpop.xlane.xlu0 %1059
        %v1061 = vsub.f32 %v1054, %v1060
        %v1062 = vmul.f32 %v1061, 1.442695
        %v1063 = vpow.pop %v1062
        %v1064 = vsel %vm1057, %v1063, 0.0
        %1065 = vadd.xlane.f32.xlu0 %v1064
        %v1066 = vpop.xlane.xlu0 %1065
        %v1067 = vrcp.pop %v1066
        %v1068 = vmul.f32 %v1066, %v1067
        %v1069 = vsub.f32 1.0, %v1068
        %v1070 = vmul.f32 %v1067, %v1069
        %v1071 = vadd.f32 %v1067, %v1070
        %vm1072 = vweird.f32 %v1066
        %vm1073 = vweird.f32 %v1067
        %vm1074 = vmor %vm1072, %vm1073
        %v1075 = vsel %vm1074, %v1067, %v1071
        %v1076 = vand.u32 2147483647, %v1066
        %vm1077 = vcmp.eq.f32.partialorder %v1076, 8.507059e+37
        %v1078 = vand.u32 %v1066, 2147483648
        %v1079 = vor.u32 1.1754944e-38, %v1078
        %v1080 = vsel %vm1077, %v1079, %v1075
        %v1081 = vmul.f32 %v1063, %v1080
        %v1082 = vpack.c.bf16 %v1081, %v1081
        %1083 = vrot.lane.b32.xlu0 %v1033, 64
        %v1084 = vpop.permute.xlu0 %1083
        %vm1085 = vcmask 56320
        %v1087 = vsel %vm1085, %v1082, 0
        %vm1089 = vcmask 1042432
        %vm1090 = vcmask 1043456
        %v1091 = vsel %vm1089, 4294967295, 65535
        %v1092 = vsel %vm1090, %v1091, 0
        %v1094 = vand.u32 %v1084, %v1092
        %1096 = vmatpush.bf16.msra.mxu0 0
        %1097 = vmatpush.bf16.msra.mxu0 0
        %1098 = vmatpush.bf16.msra.mxu0 0
        %1099 = vmatpush.bf16.msra.mxu0 0
        %1100 = vmatpush.bf16.msra.mxu0 0
        %1101 = vmatpush.bf16.msra.mxu0 0
        %1102 = vmatpush.bf16.msra.mxu0 0
        %1103 = vmatpush.bf16.msra.mxu0 %v1094
        %1104 = vmatmul.bf16.gmra.mxu0 %v1087
        %v1105 = vpop.f32.mrf.mxu0
        %v1106 = vadd.f32 0.0, %v1105
        %v1107 = vpop.f32.mrf.mxu0
        %1108 = vdwg.mxu0
        %1109 = vrot.lane.b32.xlu0 %v1033, 120
        %v1110 = vpop.permute.xlu0 %1109
        %1111 = vrot.lane.b32.xlu0 %v1033, 88
        %v1112 = vpop.permute.xlu0 %1111
        %v1114 = vsel %vm1037, %v1110, 0
        %v1117 = vsel %vm1037, %v1112, 0
        %1119 = vmatpush.bf16.xpose.msra.mxu0 0
        %1120 = vmatpush.bf16.xpose.msra.mxu0 0
        %1121 = vmatpush.bf16.xpose.msra.mxu0 0
        %1122 = vmatpush.bf16.xpose.msra.mxu0 0
        %1123 = vmatpush.bf16.xpose.msra.mxu0 0
        %1124 = vmatpush.bf16.xpose.msra.mxu0 0
        %1125 = vmatpush.bf16.xpose.msra.mxu0 0
        %1126 = vmatpush.bf16.xpose.msra.mxu0 %v1117
        %1127 = vmatmul.bf16.gmra.mxu0 %v1114
        %v1128 = vpop.f32.mrf.mxu0
        %v1129 = vadd.f32 0.0, %v1128
        %v1130 = vpop.f32.mrf.mxu0
        %1131 = vdwg.mxu0
        %v1132 = vsel %vm1057, %v1129, -inf
        %1133 = vmax.xlane.f32.xlu0 %v1132
        %v1134 = vpop.xlane.xlu0 %1133
        %v1135 = vsub.f32 %v1129, %v1134
        %v1136 = vmul.f32 %v1135, 1.442695
        %v1137 = vpow.pop %v1136
        %v1138 = vsel %vm1057, %v1137, 0.0
        %1139 = vadd.xlane.f32.xlu0 %v1138
        %v1140 = vpop.xlane.xlu0 %1139
        %v1141 = vrcp.pop %v1140
        %v1142 = vmul.f32 %v1140, %v1141
        %v1143 = vsub.f32 1.0, %v1142
        %v1144 = vmul.f32 %v1141, %v1143
        %v1145 = vadd.f32 %v1141, %v1144
        %vm1146 = vweird.f32 %v1140
        %vm1147 = vweird.f32 %v1141
        %vm1148 = vmor %vm1146, %vm1147
        %v1149 = vsel %vm1148, %v1141, %v1145
        %v1150 = vand.u32 2147483647, %v1140
        %vm1151 = vcmp.eq.f32.partialorder %v1150, 8.507059e+37
        %v1152 = vand.u32 %v1140, 2147483648
        %v1153 = vor.u32 1.1754944e-38, %v1152
        %v1154 = vsel %vm1151, %v1153, %v1149
        %v1155 = vmul.f32 %v1137, %v1154
        %v1156 = vpack.c.bf16 %v1155, %v1155
        %1157 = vrot.lane.b32.xlu0 %v1033, 56
        %v1158 = vpop.permute.xlu0 %1157
        %v1160 = vsel %vm1085, %v1156, 0
        %v1163 = vand.u32 %v1158, %v1092
        %1165 = vmatpush.bf16.msra.mxu0 0
        %1166 = vmatpush.bf16.msra.mxu0 0
        %1167 = vmatpush.bf16.msra.mxu0 0
        %1168 = vmatpush.bf16.msra.mxu0 0
        %1169 = vmatpush.bf16.msra.mxu0 0
        %1170 = vmatpush.bf16.msra.mxu0 0
        %1171 = vmatpush.bf16.msra.mxu0 0
        %1172 = vmatpush.bf16.msra.mxu0 %v1163
        %1173 = vmatmul.bf16.gmra.mxu0 %v1160
        %v1174 = vpop.f32.mrf.mxu0
        %v1175 = vadd.f32 0.0, %v1174
        %v1176 = vpop.f32.mrf.mxu0
        %1177 = vdwg.mxu0
        %1178 = vrot.lane.b32.xlu0 %v1033, 112
        %v1179 = vpop.permute.xlu0 %1178
        %1180 = vrot.lane.b32.xlu0 %v1033, 80
        %v1181 = vpop.permute.xlu0 %1180
        %v1183 = vsel %vm1037, %v1179, 0
        %v1186 = vsel %vm1037, %v1181, 0
        %1188 = vmatpush.bf16.xpose.msra.mxu0 0
        %1189 = vmatpush.bf16.xpose.msra.mxu0 0
        %1190 = vmatpush.bf16.xpose.msra.mxu0 0
        %1191 = vmatpush.bf16.xpose.msra.mxu0 0
        %1192 = vmatpush.bf16.xpose.msra.mxu0 0
        %1193 = vmatpush.bf16.xpose.msra.mxu0 0
        %1194 = vmatpush.bf16.xpose.msra.mxu0 0
        %1195 = vmatpush.bf16.xpose.msra.mxu0 %v1186
        %1196 = vmatmul.bf16.gmra.mxu0 %v1183
        %v1197 = vpop.f32.mrf.mxu0
        %v1198 = vadd.f32 0.0, %v1197
        %v1199 = vpop.f32.mrf.mxu0
        %1200 = vdwg.mxu0
        %v1201 = vsel %vm1057, %v1198, -inf
        %1202 = vmax.xlane.f32.xlu0 %v1201
        %v1203 = vpop.xlane.xlu0 %1202
        %v1204 = vsub.f32 %v1198, %v1203
        %v1205 = vmul.f32 %v1204, 1.442695
        %v1206 = vpow.pop %v1205
        %v1207 = vsel %vm1057, %v1206, 0.0
        %1208 = vadd.xlane.f32.xlu0 %v1207
        %v1209 = vpop.xlane.xlu0 %1208
        %v1210 = vrcp.pop %v1209
        %v1211 = vmul.f32 %v1209, %v1210
        %v1212 = vsub.f32 1.0, %v1211
        %v1213 = vmul.f32 %v1210, %v1212
        %v1214 = vadd.f32 %v1210, %v1213
        %vm1215 = vweird.f32 %v1209
        %vm1216 = vweird.f32 %v1210
        %vm1217 = vmor %vm1215, %vm1216
        %v1218 = vsel %vm1217, %v1210, %v1214
        %v1219 = vand.u32 2147483647, %v1209
        %vm1220 = vcmp.eq.f32.partialorder %v1219, 8.507059e+37
        %v1221 = vand.u32 %v1209, 2147483648
        %v1222 = vor.u32 1.1754944e-38, %v1221
        %v1223 = vsel %vm1220, %v1222, %v1218
        %v1224 = vmul.f32 %v1206, %v1223
        %v1225 = vpack.c.bf16 %v1224, %v1224
        %1226 = vrot.lane.b32.xlu0 %v1033, 48
        %v1227 = vpop.permute.xlu0 %1226
        %v1229 = vsel %vm1085, %v1225, 0
        %v1232 = vand.u32 %v1227, %v1092
        %1234 = vmatpush.bf16.msra.mxu0 0
        %1235 = vmatpush.bf16.msra.mxu0 0
        %1236 = vmatpush.bf16.msra.mxu0 0
        %1237 = vmatpush.bf16.msra.mxu0 0
        %1238 = vmatpush.bf16.msra.mxu0 0
        %1239 = vmatpush.bf16.msra.mxu0 0
        %1240 = vmatpush.bf16.msra.mxu0 0
        %1241 = vmatpush.bf16.msra.mxu0 %v1232
        %1242 = vmatmul.bf16.gmra.mxu0 %v1229
        %v1243 = vpop.f32.mrf.mxu0
        %v1244 = vadd.f32 0.0, %v1243
        %v1245 = vpop.f32.mrf.mxu0
        %1246 = vdwg.mxu0
        %1247 = vrot.lane.b32.xlu0 %v1033, 104
        %v1248 = vpop.permute.xlu0 %1247
        %1249 = vrot.lane.b32.xlu0 %v1033, 72
        %v1250 = vpop.permute.xlu0 %1249
        %v1252 = vsel %vm1037, %v1248, 0
        %v1255 = vsel %vm1037, %v1250, 0
        %1257 = vmatpush.bf16.xpose.msra.mxu0 0
        %1258 = vmatpush.bf16.xpose.msra.mxu0 0
        %1259 = vmatpush.bf16.xpose.msra.mxu0 0
        %1260 = vmatpush.bf16.xpose.msra.mxu0 0
        %1261 = vmatpush.bf16.xpose.msra.mxu0 0
        %1262 = vmatpush.bf16.xpose.msra.mxu0 0
        %1263 = vmatpush.bf16.xpose.msra.mxu0 0
        %1264 = vmatpush.bf16.xpose.msra.mxu0 %v1255
        %1265 = vmatmul.bf16.gmra.mxu0 %v1252
        %v1266 = vpop.f32.mrf.mxu0
        %v1267 = vadd.f32 0.0, %v1266
        %v1268 = vpop.f32.mrf.mxu0
        %1269 = vdwg.mxu0
        %v1270 = vsel %vm1057, %v1267, -inf
        %1271 = vmax.xlane.f32.xlu0 %v1270
        %v1272 = vpop.xlane.xlu0 %1271
        %v1273 = vsub.f32 %v1267, %v1272
        %v1274 = vmul.f32 %v1273, 1.442695
        %v1275 = vpow.pop %v1274
        %v1276 = vsel %vm1057, %v1275, 0.0
        %1277 = vadd.xlane.f32.xlu0 %v1276
        %v1278 = vpop.xlane.xlu0 %1277
        %v1279 = vrcp.pop %v1278
        %v1280 = vmul.f32 %v1278, %v1279
        %v1281 = vsub.f32 1.0, %v1280
        %v1282 = vmul.f32 %v1279, %v1281
        %v1283 = vadd.f32 %v1279, %v1282
        %vm1284 = vweird.f32 %v1278
        %vm1285 = vweird.f32 %v1279
        %vm1286 = vmor %vm1284, %vm1285
        %v1287 = vsel %vm1286, %v1279, %v1283
        %v1288 = vand.u32 2147483647, %v1278
        %vm1289 = vcmp.eq.f32.partialorder %v1288, 8.507059e+37
        %v1290 = vand.u32 %v1278, 2147483648
        %v1291 = vor.u32 1.1754944e-38, %v1290
        %v1292 = vsel %vm1289, %v1291, %v1287
        %v1293 = vmul.f32 %v1275, %v1292
        %v1294 = vpack.c.bf16 %v1293, %v1293
        %1295 = vrot.lane.b32.xlu0 %v1033, 40
        %v1296 = vpop.permute.xlu0 %1295
        %v1298 = vsel %vm1085, %v1294, 0
        %v1301 = vand.u32 %v1296, %v1092
        %1303 = vmatpush.bf16.msra.mxu0 0
        %1304 = vmatpush.bf16.msra.mxu0 0
        %1305 = vmatpush.bf16.msra.mxu0 0
        %1306 = vmatpush.bf16.msra.mxu0 0
        %1307 = vmatpush.bf16.msra.mxu0 0
        %1308 = vmatpush.bf16.msra.mxu0 0
        %1309 = vmatpush.bf16.msra.mxu0 0
        %1310 = vmatpush.bf16.msra.mxu0 %v1301
        %1311 = vmatmul.bf16.gmra.mxu0 %v1298
        %v1312 = vpop.f32.mrf.mxu0
        %v1313 = vadd.f32 0.0, %v1312
        %v1314 = vpop.f32.mrf.mxu0
        %1315 = vdwg.mxu0
        %1317 = vrot.lane.b32.xlu0 %v1175, 8
        %v1318 = vpop.permute.xlu0 %1317
        %1321 = vrot.lane.b32.xlu0 %v1244, 16
        %v1322 = vpop.permute.xlu0 %1321
        %1325 = vrot.lane.b32.xlu0 %v1313, 24
        %v1326 = vpop.permute.xlu0 %1325
        %v1328 = vsel %vm1037, %v1106, %v1318
        %v1329 = vsel %vm971, %v1328, %v1322
        %vm1330 = vcmask 195584
        %v1331 = vsel %vm1330, %v1329, %v1326
        %v1332 = vpack.c.bf16 %v1031, %v1029
        %v1334 = vshrl.u32 %v1332, 16
        %v1336 = vrot.slane %v1334, 3
        %v1337 = vshll.u32 %v1332, 16
        %v1339 = vrot.slane %v1337, 4
        %v1340 = vor.u32 %v1336, %v1339
        %1341 = vrot.lane.b32.xlu0 %v1340, 96
        %v1342 = vpop.permute.xlu0 %1341
        %v1344 = vsel %vm1037, %v1340, 0
        %v1347 = vsel %vm1037, %v1342, 0
        %1349 = vmatpush.bf16.xpose.msra.mxu0 0
        %1350 = vmatpush.bf16.xpose.msra.mxu0 0
        %1351 = vmatpush.bf16.xpose.msra.mxu0 0
        %1352 = vmatpush.bf16.xpose.msra.mxu0 0
        %1353 = vmatpush.bf16.xpose.msra.mxu0 0
        %1354 = vmatpush.bf16.xpose.msra.mxu0 0
        %1355 = vmatpush.bf16.xpose.msra.mxu0 0
        %1356 = vmatpush.bf16.xpose.msra.mxu0 %v1347
        %1357 = vmatmul.bf16.gmra.mxu0 %v1344
        %v1358 = vpop.f32.mrf.mxu0
        %v1359 = vadd.f32 0.0, %v1358
        %v1360 = vpop.f32.mrf.mxu0
        %1361 = vdwg.mxu0
        %v1362 = vsel %vm1057, %v1359, -inf
        %1363 = vmax.xlane.f32.xlu0 %v1362
        %v1364 = vpop.xlane.xlu0 %1363
        %v1365 = vsub.f32 %v1359, %v1364
        %v1366 = vmul.f32 %v1365, 1.442695
        %v1367 = vpow.pop %v1366
        %v1368 = vsel %vm1057, %v1367, 0.0
        %1369 = vadd.xlane.f32.xlu0 %v1368
        %v1370 = vpop.xlane.xlu0 %1369
        %v1371 = vrcp.pop %v1370
        %v1372 = vmul.f32 %v1370, %v1371
        %v1373 = vsub.f32 1.0, %v1372
        %v1374 = vmul.f32 %v1371, %v1373
        %v1375 = vadd.f32 %v1371, %v1374
        %vm1376 = vweird.f32 %v1370
        %vm1377 = vweird.f32 %v1371
        %vm1378 = vmor %vm1376, %vm1377
        %v1379 = vsel %vm1378, %v1371, %v1375
        %v1380 = vand.u32 2147483647, %v1370
        %vm1381 = vcmp.eq.f32.partialorder %v1380, 8.507059e+37
        %v1382 = vand.u32 %v1370, 2147483648
        %v1383 = vor.u32 1.1754944e-38, %v1382
        %v1384 = vsel %vm1381, %v1383, %v1379
        %v1385 = vmul.f32 %v1367, %v1384
        %v1386 = vpack.c.bf16 %v1385, %v1385
        %1387 = vrot.lane.b32.xlu0 %v1340, 64
        %v1388 = vpop.permute.xlu0 %1387
        %v1390 = vsel %vm1085, %v1386, 0
        %v1393 = vand.u32 %v1388, %v1092
        %1395 = vmatpush.bf16.msra.mxu0 0
        %1396 = vmatpush.bf16.msra.mxu0 0
        %1397 = vmatpush.bf16.msra.mxu0 0
        %1398 = vmatpush.bf16.msra.mxu0 0
        %1399 = vmatpush.bf16.msra.mxu0 0
        %1400 = vmatpush.bf16.msra.mxu0 0
        %1401 = vmatpush.bf16.msra.mxu0 0
        %1402 = vmatpush.bf16.msra.mxu0 %v1393
        %1403 = vmatmul.bf16.gmra.mxu0 %v1390
        %v1404 = vpop.f32.mrf.mxu0
        %v1405 = vadd.f32 0.0, %v1404
        %v1406 = vpop.f32.mrf.mxu0
        %1407 = vdwg.mxu0
        %1408 = vrot.lane.b32.xlu0 %v1340, 120
        %v1409 = vpop.permute.xlu0 %1408
        %1410 = vrot.lane.b32.xlu0 %v1340, 88
        %v1411 = vpop.permute.xlu0 %1410
        %v1413 = vsel %vm1037, %v1409, 0
        %v1416 = vsel %vm1037, %v1411, 0
        %1418 = vmatpush.bf16.xpose.msra.mxu0 0
        %1419 = vmatpush.bf16.xpose.msra.mxu0 0
        %1420 = vmatpush.bf16.xpose.msra.mxu0 0
        %1421 = vmatpush.bf16.xpose.msra.mxu0 0
        %1422 = vmatpush.bf16.xpose.msra.mxu0 0
        %1423 = vmatpush.bf16.xpose.msra.mxu0 0
        %1424 = vmatpush.bf16.xpose.msra.mxu0 0
        %1425 = vmatpush.bf16.xpose.msra.mxu0 %v1416
        %1426 = vmatmul.bf16.gmra.mxu0 %v1413
        %v1427 = vpop.f32.mrf.mxu0
        %v1428 = vadd.f32 0.0, %v1427
        %v1429 = vpop.f32.mrf.mxu0
        %1430 = vdwg.mxu0
        %v1431 = vsel %vm1057, %v1428, -inf
        %1432 = vmax.xlane.f32.xlu0 %v1431
        %v1433 = vpop.xlane.xlu0 %1432
        %v1434 = vsub.f32 %v1428, %v1433
        %v1435 = vmul.f32 %v1434, 1.442695
        %v1436 = vpow.pop %v1435
        %v1437 = vsel %vm1057, %v1436, 0.0
        %1438 = vadd.xlane.f32.xlu0 %v1437
        %v1439 = vpop.xlane.xlu0 %1438
        %v1440 = vrcp.pop %v1439
        %v1441 = vmul.f32 %v1439, %v1440
        %v1442 = vsub.f32 1.0, %v1441
        %v1443 = vmul.f32 %v1440, %v1442
        %v1444 = vadd.f32 %v1440, %v1443
        %vm1445 = vweird.f32 %v1439
        %vm1446 = vweird.f32 %v1440
        %vm1447 = vmor %vm1445, %vm1446
        %v1448 = vsel %vm1447, %v1440, %v1444
        %v1449 = vand.u32 2147483647, %v1439
        %vm1450 = vcmp.eq.f32.partialorder %v1449, 8.507059e+37
        %v1451 = vand.u32 %v1439, 2147483648
        %v1452 = vor.u32 1.1754944e-38, %v1451
        %v1453 = vsel %vm1450, %v1452, %v1448
        %v1454 = vmul.f32 %v1436, %v1453
        %v1455 = vpack.c.bf16 %v1454, %v1454
        %1456 = vrot.lane.b32.xlu0 %v1340, 56
        %v1457 = vpop.permute.xlu0 %1456
        %v1459 = vsel %vm1085, %v1455, 0
        %v1462 = vand.u32 %v1457, %v1092
        %1464 = vmatpush.bf16.msra.mxu0 0
        %1465 = vmatpush.bf16.msra.mxu0 0
        %1466 = vmatpush.bf16.msra.mxu0 0
        %1467 = vmatpush.bf16.msra.mxu0 0
        %1468 = vmatpush.bf16.msra.mxu0 0
        %1469 = vmatpush.bf16.msra.mxu0 0
        %1470 = vmatpush.bf16.msra.mxu0 0
        %1471 = vmatpush.bf16.msra.mxu0 %v1462
        %1472 = vmatmul.bf16.gmra.mxu0 %v1459
        %v1473 = vpop.f32.mrf.mxu0
        %v1474 = vadd.f32 0.0, %v1473
        %v1475 = vpop.f32.mrf.mxu0
        %1476 = vdwg.mxu0
        %1477 = vrot.lane.b32.xlu0 %v1340, 112
        %v1478 = vpop.permute.xlu0 %1477
        %1479 = vrot.lane.b32.xlu0 %v1340, 80
        %v1480 = vpop.permute.xlu0 %1479
        %v1482 = vsel %vm1037, %v1478, 0
        %v1485 = vsel %vm1037, %v1480, 0
        %1487 = vmatpush.bf16.xpose.msra.mxu0 0
        %1488 = vmatpush.bf16.xpose.msra.mxu0 0
        %1489 = vmatpush.bf16.xpose.msra.mxu0 0
        %1490 = vmatpush.bf16.xpose.msra.mxu0 0
        %1491 = vmatpush.bf16.xpose.msra.mxu0 0
        %1492 = vmatpush.bf16.xpose.msra.mxu0 0
        %1493 = vmatpush.bf16.xpose.msra.mxu0 0
        %1494 = vmatpush.bf16.xpose.msra.mxu0 %v1485
        %1495 = vmatmul.bf16.gmra.mxu0 %v1482
        %v1496 = vpop.f32.mrf.mxu0
        %v1497 = vadd.f32 0.0, %v1496
        %v1498 = vpop.f32.mrf.mxu0
        %1499 = vdwg.mxu0
        %v1500 = vsel %vm1057, %v1497, -inf
        %1501 = vmax.xlane.f32.xlu0 %v1500
        %v1502 = vpop.xlane.xlu0 %1501
        %v1503 = vsub.f32 %v1497, %v1502
        %v1504 = vmul.f32 %v1503, 1.442695
        %v1505 = vpow.pop %v1504
        %v1506 = vsel %vm1057, %v1505, 0.0
        %1507 = vadd.xlane.f32.xlu0 %v1506
        %v1508 = vpop.xlane.xlu0 %1507
        %v1509 = vrcp.pop %v1508
        %v1510 = vmul.f32 %v1508, %v1509
        %v1511 = vsub.f32 1.0, %v1510
        %v1512 = vmul.f32 %v1509, %v1511
        %v1513 = vadd.f32 %v1509, %v1512
        %vm1514 = vweird.f32 %v1508
        %vm1515 = vweird.f32 %v1509
        %vm1516 = vmor %vm1514, %vm1515
        %v1517 = vsel %vm1516, %v1509, %v1513
        %v1518 = vand.u32 2147483647, %v1508
        %vm1519 = vcmp.eq.f32.partialorder %v1518, 8.507059e+37
        %v1520 = vand.u32 %v1508, 2147483648
        %v1521 = vor.u32 1.1754944e-38, %v1520
        %v1522 = vsel %vm1519, %v1521, %v1517
        %v1523 = vmul.f32 %v1505, %v1522
        %v1524 = vpack.c.bf16 %v1523, %v1523
        %1525 = vrot.lane.b32.xlu0 %v1340, 48
        %v1526 = vpop.permute.xlu0 %1525
        %v1528 = vsel %vm1085, %v1524, 0
        %v1531 = vand.u32 %v1526, %v1092
        %1533 = vmatpush.bf16.msra.mxu0 0
        %1534 = vmatpush.bf16.msra.mxu0 0
        %1535 = vmatpush.bf16.msra.mxu0 0
        %1536 = vmatpush.bf16.msra.mxu0 0
        %1537 = vmatpush.bf16.msra.mxu0 0
        %1538 = vmatpush.bf16.msra.mxu0 0
        %1539 = vmatpush.bf16.msra.mxu0 0
        %1540 = vmatpush.bf16.msra.mxu0 %v1531
        %1541 = vmatmul.bf16.gmra.mxu0 %v1528
        %v1542 = vpop.f32.mrf.mxu0
        %v1543 = vadd.f32 0.0, %v1542
        %v1544 = vpop.f32.mrf.mxu0
        %1545 = vdwg.mxu0
        %1546 = vrot.lane.b32.xlu0 %v1340, 104
        %v1547 = vpop.permute.xlu0 %1546
        %1548 = vrot.lane.b32.xlu0 %v1340, 72
        %v1549 = vpop.permute.xlu0 %1548
        %v1551 = vsel %vm1037, %v1547, 0
        %v1554 = vsel %vm1037, %v1549, 0
        %1556 = vmatpush.bf16.xpose.msra.mxu0 0
        %1557 = vmatpush.bf16.xpose.msra.mxu0 0
        %1558 = vmatpush.bf16.xpose.msra.mxu0 0
        %1559 = vmatpush.bf16.xpose.msra.mxu0 0
        %1560 = vmatpush.bf16.xpose.msra.mxu0 0
        %1561 = vmatpush.bf16.xpose.msra.mxu0 0
        %1562 = vmatpush.bf16.xpose.msra.mxu0 0
        %1563 = vmatpush.bf16.xpose.msra.mxu0 %v1554
        %1564 = vmatmul.bf16.gmra.mxu0 %v1551
        %v1565 = vpop.f32.mrf.mxu0
        %v1566 = vadd.f32 0.0, %v1565
        %v1567 = vpop.f32.mrf.mxu0
        %1568 = vdwg.mxu0
        %v1569 = vsel %vm1057, %v1566, -inf
        %1570 = vmax.xlane.f32.xlu0 %v1569
        %v1571 = vpop.xlane.xlu0 %1570
        %v1572 = vsub.f32 %v1566, %v1571
        %v1573 = vmul.f32 %v1572, 1.442695
        %v1574 = vpow.pop %v1573
        %v1575 = vsel %vm1057, %v1574, 0.0
        %1576 = vadd.xlane.f32.xlu0 %v1575
        %v1577 = vpop.xlane.xlu0 %1576
        %v1578 = vrcp.pop %v1577
        %v1579 = vmul.f32 %v1577, %v1578
        %v1580 = vsub.f32 1.0, %v1579
        %v1581 = vmul.f32 %v1578, %v1580
        %v1582 = vadd.f32 %v1578, %v1581
        %vm1583 = vweird.f32 %v1577
        %vm1584 = vweird.f32 %v1578
        %vm1585 = vmor %vm1583, %vm1584
        %v1586 = vsel %vm1585, %v1578, %v1582
        %v1587 = vand.u32 2147483647, %v1577
        %vm1588 = vcmp.eq.f32.partialorder %v1587, 8.507059e+37
        %v1589 = vand.u32 %v1577, 2147483648
        %v1590 = vor.u32 1.1754944e-38, %v1589
        %v1591 = vsel %vm1588, %v1590, %v1586
        %v1592 = vmul.f32 %v1574, %v1591
        %v1593 = vpack.c.bf16 %v1592, %v1592
        %1594 = vrot.lane.b32.xlu0 %v1340, 40
        %v1595 = vpop.permute.xlu0 %1594
        %v1597 = vsel %vm1085, %v1593, 0
        %v1600 = vand.u32 %v1595, %v1092
        %1602 = vmatpush.bf16.msra.mxu0 0
        %1603 = vmatpush.bf16.msra.mxu0 0
        %1604 = vmatpush.bf16.msra.mxu0 0
        %1605 = vmatpush.bf16.msra.mxu0 0
        %1606 = vmatpush.bf16.msra.mxu0 0
        %1607 = vmatpush.bf16.msra.mxu0 0
        %1608 = vmatpush.bf16.msra.mxu0 0
        %1609 = vmatpush.bf16.msra.mxu0 %v1600
        %1610 = vmatmul.bf16.gmra.mxu0 %v1597
        %v1611 = vpop.f32.mrf.mxu0
        %v1612 = vadd.f32 0.0, %v1611
        %v1613 = vpop.f32.mrf.mxu0
        %1614 = vdwg.mxu0
        %1616 = vrot.lane.b32.xlu0 %v1474, 8
        %v1617 = vpop.permute.xlu0 %1616
        %1620 = vrot.lane.b32.xlu0 %v1543, 16
        %v1621 = vpop.permute.xlu0 %1620
        %1624 = vrot.lane.b32.xlu0 %v1612, 24
        %v1625 = vpop.permute.xlu0 %1624
        %v1627 = vsel %vm1037, %v1405, %v1617
        %v1628 = vsel %vm971, %v1627, %v1621
        %v1629 = vsel %vm1330, %v1628, %v1625
        %v1631 = vrot.slane %v1629, 1
        %v1633 = vsel %vm956, %v1331, %v1631
        %v1634 = vpack.c.bf16 %v1631, %v1633
        %v1636 = vperm.slane %v998, 0
        %v1642 = vunpack.c.l.b16 %v994
        %v1643 = vunpack.c.l.b16 %v995
        %v1644 = vunpack.c.l.b16 %v996
        %v1645 = vunpack.c.l.b16 %v997
        %v1646 = vpack.c.b16 %v1643, %v1642
        %v1647 = vpack.c.b16 %v1645, %v1644
        %v1651 = vsel %vm1015, %v1634, 0
        %1653 = vmatpush.bf16.msra.mxu0 0
        %1654 = vmatpush.bf16.msra.mxu0 0
        %1655 = vmatpush.bf16.msra.mxu0 0
        %1656 = vmatpush.bf16.msra.mxu0 0
        %1657 = vmatpush.bf16.msra.mxu0 0
        %1658 = vmatpush.bf16.msra.mxu0 0
        %1659 = vmatpush.bf16.msra.mxu0 %v1647
        %1660 = vmatpush.bf16.msra.mxu0 %v1646
        %1661 = vmatmul.bf16.gmra.mxu0 %v1651
        %v1662 = vpop.f32.mrf.mxu0
        %v1663 = vadd.f32 %v1636, %v1662
        %v1664 = vpop.f32.mrf.mxu0
        %v1665 = vadd.f32 %v1636, %v1664
        %1666 = vdwg.mxu0
        %v1667 = vadd.f32 %v985, %v1663
        %v1668 = vadd.f32 %v987, %v1665
        %v1669 = vld [vmem:[%s804] sm:$0x1]
        %v1670 = vld [vmem:[%s807] sm:$0x1]
        %v1671 = vsel %vm1015, %v1667, 0.0
        %1672 = vadd.xlane.f32.xlu0 %v1671
        %v1673 = vpop.xlane.xlu0 %1672
        %vm1674 = vcmask 259072
        %v1675 = vsel %vm1674, %v1668, 0.0
        %1676 = vadd.xlane.f32.xlu0 %v1675
        %v1677 = vpop.xlane.xlu0 %1676
        %v1678 = vrcp.pop 32.0
        %v1679 = vmul.f32 32.0, %v1678
        %v1680 = vsub.f32 1.0, %v1679
        %v1681 = vmul.f32 %v1678, %v1680
        %v1682 = vadd.f32 %v1678, %v1681
        %vm1683 = vweird.f32 %v1678
        %v1684 = vsel %vm1683, %v1678, %v1682
        %v1685 = vmul.f32 %v1673, %v1684
        %v1686 = vmul.f32 %v1677, %v1684
        %v1687 = vsub.f32 %v1667, %v1685
        %v1688 = vsub.f32 %v1668, %v1686
        %v1689 = vmul.f32 %v1687, %v1687
        %v1690 = vmul.f32 %v1688, %v1688
        %v1691 = vsel %vm1015, %v1689, 0.0
        %1692 = vadd.xlane.f32.xlu0 %v1691
        %v1693 = vpop.xlane.xlu0 %1692
        %v1694 = vsel %vm1674, %v1690, 0.0
        %1695 = vadd.xlane.f32.xlu0 %v1694
        %v1696 = vpop.xlane.xlu0 %1695
        %v1697 = vmul.f32 %v1693, %v1684
        %v1698 = vmul.f32 %v1696, %v1684
        %v1699 = vadd.f32 %v1697, 1e-05
        %v1700 = vadd.f32 %v1698, 1e-05
        %v1701 = vrsqrt.pop %v1699
        %v1702 = vmul.f32 %v1701, %v1699
        %v1703 = vmul.f32 %v1702, %v1701
        %v1704 = vmul.f32 0.5, %v1703
        %v1705 = vsub.f32 1.5, %v1704
        %v1706 = vmul.f32 %v1701, %v1705
        %vm1707 = vweird.f32 %v1699
        %vm1708 = vweird.f32 %v1701
        %vm1709 = vmor %vm1707, %vm1708
        %v1710 = vsel %vm1709, %v1701, %v1706
        %v1711 = vrsqrt.pop %v1700
        %v1712 = vmul.f32 %v1711, %v1700
        %v1713 = vmul.f32 %v1712, %v1711
        %v1714 = vmul.f32 0.5, %v1713
        %v1715 = vsub.f32 1.5, %v1714
        %v1716 = vmul.f32 %v1711, %v1715
        %vm1717 = vweird.f32 %v1700
        %vm1718 = vweird.f32 %v1711
        %vm1719 = vmor %vm1717, %vm1718
        %v1720 = vsel %vm1719, %v1711, %v1716
        %v1721 = vmul.f32 %v1687, %v1710
        %v1722 = vmul.f32 %v1688, %v1720
        %v1724 = vperm.slane %v1669, 0
        %v1726 = vmul.f32 %v1721, %v1724
        %v1727 = vmul.f32 %v1722, %v1724
        %v1729 = vperm.slane %v1670, 0
        %v1731 = vadd.f32 %v1726, %v1729
        %v1732 = vadd.f32 %v1727, %v1729
        %v1733 = vld [vmem:[%s812] sm:$0xf]
        %v1734 = vld [vmem:[%s812 + $0x4] sm:$0xf]
        %v1735 = vld [vmem:[%s812 + $0x8] sm:$0xf]
        %v1736 = vld [vmem:[%s812 + $0xc] sm:$0xf]
        %v1737 = vpack.c.bf16 %v1732, %v1731
        %v1738 = vld [vmem:[%s815] sm:$0x1]
        %v1740 = vperm.slane %v1738, 0
        %v1746 = vunpack.c.l.b16 %v1733
        %v1747 = vunpack.c.l.b16 %v1734
        %v1748 = vunpack.c.l.b16 %v1735
        %v1749 = vunpack.c.l.b16 %v1736
        %v1750 = vpack.c.b16 %v1747, %v1746
        %v1751 = vpack.c.b16 %v1749, %v1748
        %v1755 = vsel %vm1015, %v1737, 0
        %1757 = vmatpush.bf16.msra.mxu0 0
        %1758 = vmatpush.bf16.msra.mxu0 0
        %1759 = vmatpush.bf16.msra.mxu0 0
        %1760 = vmatpush.bf16.msra.mxu0 0
        %1761 = vmatpush.bf16.msra.mxu0 0
        %1762 = vmatpush.bf16.msra.mxu0 0
        %1763 = vmatpush.bf16.msra.mxu0 %v1751
        %1764 = vmatpush.bf16.msra.mxu0 %v1750
        %1765 = vmatmul.bf16.gmra.mxu0 %v1755
        %v1766 = vpop.f32.mrf.mxu0
        %v1767 = vadd.f32 %v1740, %v1766
        %v1768 = vpop.f32.mrf.mxu0
        %v1769 = vadd.f32 %v1740, %v1768
        %1770 = vdwg.mxu0
        %v1771 = vmax.f32 %v1767, 0.0
        %v1772 = vmax.f32 %v1769, 0.0
        %v1773 = vld [vmem:[%s820] sm:$0xf]
        %v1774 = vld [vmem:[%s820 + $0x4] sm:$0xf]
        %v1775 = vld [vmem:[%s820 + $0x8] sm:$0xf]
        %v1776 = vld [vmem:[%s820 + $0xc] sm:$0xf]
        %v1777 = vld [vmem:[%s820 + $0x10] sm:$0xf]
        %v1778 = vld [vmem:[%s820 + $0x14] sm:$0xf]
        %v1779 = vld [vmem:[%s820 + $0x18] sm:$0xf]
        %v1780 = vld [vmem:[%s820 + $0x1c] sm:$0xf]
        %v1781 = vpack.c.bf16 %v1772, %v1771
        %v1782 = vld [vmem:[%s823] sm:$0x1]
        %v1784 = vperm.slane %v1782, 0
        %v1794 = vunpack.c.l.b16 %v1773
        %v1795 = vunpack.c.l.b16 %v1774
        %v1796 = vunpack.c.l.b16 %v1775
        %v1797 = vunpack.c.l.b16 %v1776
        %v1798 = vunpack.c.l.b16 %v1777
        %v1799 = vunpack.c.l.b16 %v1778
        %v1800 = vunpack.c.l.b16 %v1779
        %v1801 = vunpack.c.l.b16 %v1780
        %v1802 = vpack.c.b16 %v1795, %v1794
        %v1803 = vpack.c.b16 %v1797, %v1796
        %v1804 = vpack.c.b16 %v1799, %v1798
        %v1805 = vpack.c.b16 %v1801, %v1800
        %vm1810 = vcmask 523264
        %v1812 = vsel %vm1810, %v1781, 0
        %1814 = vmatpush.bf16.msra.mxu0 0
        %1815 = vmatpush.bf16.msra.mxu0 0
        %1816 = vmatpush.bf16.msra.mxu0 0
        %1817 = vmatpush.bf16.msra.mxu0 0
        %1818 = vmatpush.bf16.msra.mxu0 %v1805
        %1819 = vmatpush.bf16.msra.mxu0 %v1804
        %1820 = vmatpush.bf16.msra.mxu0 %v1803
        %1821 = vmatpush.bf16.msra.mxu0 %v1802
        %1822 = vmatmul.bf16.gmra.mxu0 %v1812
        %v1823 = vpop.f32.mrf.mxu0
        %v1824 = vadd.f32 %v1784, %v1823
        %v1825 = vpop.f32.mrf.mxu0
        %v1826 = vadd.f32 %v1784, %v1825
        %1827 = vdwg.mxu0
        %v1828 = vadd.f32 %v1731, %v1824
        %v1829 = vadd.f32 %v1732, %v1826
        %v1830 = vld [vmem:[%s826] sm:$0x1]
        %v1831 = vld [vmem:[%s829] sm:$0x1]
        %v1832 = vsel %vm1015, %v1828, 0.0
        %1833 = vadd.xlane.f32.xlu0 %v1832
        %v1834 = vpop.xlane.xlu0 %1833
        %v1835 = vsel %vm1674, %v1829, 0.0
        %1836 = vadd.xlane.f32.xlu0 %v1835
        %v1837 = vpop.xlane.xlu0 %1836
        %v1838 = vmul.f32 %v1834, %v1684
        %v1839 = vmul.f32 %v1837, %v1684
        %v1840 = vsub.f32 %v1828, %v1838
        %v1841 = vsub.f32 %v1829, %v1839
        %v1842 = vmul.f32 %v1840, %v1840
        %v1843 = vmul.f32 %v1841, %v1841
        %v1844 = vsel %vm1015, %v1842, 0.0
        %1845 = vadd.xlane.f32.xlu0 %v1844
        %v1846 = vpop.xlane.xlu0 %1845
        %v1847 = vsel %vm1674, %v1843, 0.0
        %1848 = vadd.xlane.f32.xlu0 %v1847
        %v1849 = vpop.xlane.xlu0 %1848
        %v1850 = vmul.f32 %v1846, %v1684
        %v1851 = vmul.f32 %v1849, %v1684
        %v1852 = vadd.f32 %v1850, 1e-05
        %v1853 = vadd.f32 %v1851, 1e-05
        %v1854 = vrsqrt.pop %v1852
        %v1855 = vmul.f32 %v1854, %v1852
        %v1856 = vmul.f32 %v1855, %v1854
        %v1857 = vmul.f32 0.5, %v1856
        %v1858 = vsub.f32 1.5, %v1857
        %v1859 = vmul.f32 %v1854, %v1858
        %vm1860 = vweird.f32 %v1852
        %vm1861 = vweird.f32 %v1854
        %vm1862 = vmor %vm1860, %vm1861
        %v1863 = vsel %vm1862, %v1854, %v1859
        %v1864 = vrsqrt.pop %v1853
        %v1865 = vmul.f32 %v1864, %v1853
        %v1866 = vmul.f32 %v1865, %v1864
        %v1867 = vmul.f32 0.5, %v1866
        %v1868 = vsub.f32 1.5, %v1867
        %v1869 = vmul.f32 %v1864, %v1868
        %vm1870 = vweird.f32 %v1853
        %vm1871 = vweird.f32 %v1864
        %vm1872 = vmor %vm1870, %vm1871
        %v1873 = vsel %vm1872, %v1864, %v1869
        %v1874 = vmul.f32 %v1840, %v1863
        %v1875 = vmul.f32 %v1841, %v1873
        %v1877 = vperm.slane %v1830, 0
        %v1879 = vmul.f32 %v1874, %v1877
        %v1880 = vmul.f32 %v1875, %v1877
        %v1882 = vperm.slane %v1831, 0
        %v1884 = vadd.f32 %v1879, %v1882
        %v1885 = vadd.f32 %v1880, %v1882
        %v1886 = vld [vmem:[%s832] sm:$0x1]
        %v1887 = vld [vmem:[%s835] sm:$0x1]
        %v1888 = vsel %vm1015, %v1884, 0.0
        %1889 = vadd.xlane.f32.xlu0 %v1888
        %v1890 = vpop.xlane.xlu0 %1889
        %v1891 = vsel %vm1674, %v1885, 0.0
        %1892 = vadd.xlane.f32.xlu0 %v1891
        %v1893 = vpop.xlane.xlu0 %1892
        %v1894 = vmul.f32 %v1890, %v1684
        %v1895 = vmul.f32 %v1893, %v1684
        %v1896 = vsub.f32 %v1884, %v1894
        %v1897 = vsub.f32 %v1885, %v1895
        %v1898 = vmul.f32 %v1896, %v1896
        %v1899 = vmul.f32 %v1897, %v1897
        %v1900 = vsel %vm1015, %v1898, 0.0
        %1901 = vadd.xlane.f32.xlu0 %v1900
        %v1902 = vpop.xlane.xlu0 %1901
        %v1903 = vsel %vm1674, %v1899, 0.0
        %1904 = vadd.xlane.f32.xlu0 %v1903
        %v1905 = vpop.xlane.xlu0 %1904
        %v1906 = vmul.f32 %v1902, %v1684
        %v1907 = vmul.f32 %v1905, %v1684
        %v1908 = vadd.f32 %v1906, 1e-05
        %v1909 = vadd.f32 %v1907, 1e-05
        %v1910 = vrsqrt.pop %v1908
        %v1911 = vmul.f32 %v1910, %v1908
        %v1912 = vmul.f32 %v1911, %v1910
        %v1913 = vmul.f32 0.5, %v1912
        %v1914 = vsub.f32 1.5, %v1913
        %v1915 = vmul.f32 %v1910, %v1914
        %vm1916 = vweird.f32 %v1908
        %vm1917 = vweird.f32 %v1910
        %vm1918 = vmor %vm1916, %vm1917
        %v1919 = vsel %vm1918, %v1910, %v1915
        %v1920 = vrsqrt.pop %v1909
        %v1921 = vmul.f32 %v1920, %v1909
        %v1922 = vmul.f32 %v1921, %v1920
        %v1923 = vmul.f32 0.5, %v1922
        %v1924 = vsub.f32 1.5, %v1923
        %v1925 = vmul.f32 %v1920, %v1924
        %vm1926 = vweird.f32 %v1909
        %vm1927 = vweird.f32 %v1920
        %vm1928 = vmor %vm1926, %vm1927
        %v1929 = vsel %vm1928, %v1920, %v1925
        %v1930 = vmul.f32 %v1896, %v1919
        %v1931 = vmul.f32 %v1897, %v1929
        %v1933 = vperm.slane %v1886, 0
        %v1935 = vmul.f32 %v1930, %v1933
        %v1936 = vmul.f32 %v1931, %v1933
        %v1938 = vperm.slane %v1887, 0
        %v1940 = vadd.f32 %v1935, %v1938
        %v1941 = vadd.f32 %v1936, %v1938
        %vm1942 = vcmask 260096
        %1943 = vst.msk [vmem:[%s840] sm:$0x7f] %vm1942, %v1940
        %s1944 = scalar_lea.vmem %s840, 8
        %vm1945 = vcmask 261127
        %1946 = vst.msk [vmem:[%s1944 - $0x7] sm:$0x80] %vm1945, %v1940
        %1947 = vst.msk [vmem:[%s1944 + $0x1] sm:$0x3f] %vm1674, %v1941
        %p1948 = scmp.lt.s32.totalorder %s33, 1
        %s1949 = scalar_select %p1948, %s33, 1
        %s1950 = smul.addr %s1949, 2
        %s1951 = smul.addr %s1950, 8
        %s1952 = scalar_lea.vmem %s17, %s1951
        %s1953 = sand.u32 %s509, 1
        %s1954 = scalar_lea.sflag [#allocation3], %s1953
        %s1955 = sand.u32 %s509, 1
        %s1956 = smul.addr %s1955, 4
        %s1957 = scalar_lea.vmem [#allocation2], %s1956
        // Predicated region
        $region89: #{tpu_custom_call.1} parent=87 // pred_check
          %p1958 = pneg %p493
        $region90: #{tpu_custom_call.1} parent=87 // pred_check_branch
          %1960 = sbr.rel (%p1958) target = $region92
        $region91: #{tpu_custom_call.1} parent=87 // pred_region
          _
        $region92: #{tpu_custom_call.1} parent=87 // pred_fallthru
          _
        // Predicated region
        $region93: #{tpu_custom_call.1} parent=87 // pred_check
          %p1961 = pneg %p519
        $region94: #{tpu_custom_call.1} parent=87 // pred_check_branch
          %1963 = sbr.rel (%p1961) target = $region96
        $region95: #{tpu_custom_call.1} parent=87 // pred_region
          %1965 = vsyncadd %s1954, 0
          %s1966 = smul.addr %s33, 2
          %s1967 = smul.addr %s1966, 2
          %s1968 = scalar_lea.hbm %s18, %s1967
          %s1969 = sshll.u32 %s1957, 4
          %s1970 = int_to_ptr.vmem [resolvable:$true] %s1969
          %s1971 = sshll.u32 %s1968, 4
          %s1972 = int_to_ptr.hbm [resolvable:$true] %s1971
          %1977 = dma.vmem_to_hbm [thread:$0]  %s1970, 64, %s1972, %s1954, 32, 32, 2
        $region96: #{tpu_custom_call.1} parent=87 // pred_fallthru
          _
      $region88: #{tpu_custom_call.1} parent=5 // pred_fallthru
        _
      %p1978 = scmp.le.s32.totalorder 2, %s28
      // Predicated region
      $region97: #{tpu_custom_call.1} parent=5 // pred_check
        %p1979 = pneg %p1978
      $region98: #{tpu_custom_call.1} parent=5 // pred_check_branch
        %1981 = sbr.rel (%p1979) target = $region100
      $region99: #{tpu_custom_call.1} parent=5 // pred_region
        %s1982 = ssub.s32 %s28, 2
        // Predicated region
        $region101: #{tpu_custom_call.1} parent=99 // pred_check
          %p1983 = pneg %p499
        $region102: #{tpu_custom_call.1} parent=99 // pred_check_branch
          %1985 = sbr.rel (%p1983) target = $region104
        $region103: #{tpu_custom_call.1} parent=99 // pred_region
          %p1986 = scmp.lt.s32.totalorder %s34, 1
          %s1987 = scalar_select %p1986, %s34, 1
          %s1988 = smul.addr %s1987, 2
          %s1989 = smul.addr %s1988, 8
          %s1990 = scalar_lea.vmem %s17, %s1989
        $region104: #{tpu_custom_call.1} parent=99 // pred_fallthru
          _
        // Predicated region
        $region105: #{tpu_custom_call.1} parent=99 // pred_check
          %p1991 = pneg %p525
        $region106: #{tpu_custom_call.1} parent=99 // pred_check_branch
          %1993 = sbr.rel (%p1991) target = $region108
        $region107: #{tpu_custom_call.1} parent=99 // pred_region
          %s1994 = sand.u32 %s510, 1
          %s1995 = scalar_lea.sflag [#allocation3], %s1994
          %s1996 = sand.u32 %s510, 1
          %s1997 = smul.addr %s1996, 4
          %s1998 = scalar_lea.vmem [#allocation2], %s1997
          %2000 = dma.done %s1995, 64
        $region108: #{tpu_custom_call.1} parent=99 // pred_fallthru
          _
      $region100: #{tpu_custom_call.1} parent=5 // pred_fallthru
        _
    $region6: #{tpu_custom_call.1} parent=1 // loop_footer
      %s32 = sadd.s32 1, %s28
    $region7: #{tpu_custom_call.1} parent=1 // loop_footer_branch
      %27 = sbr.rel target = $region3
    $region8: #{tpu_custom_call.1} parent=1 // loop_exit
      _
    %2001 = vsyncpa [#allocation3], 1
    %s2002 = scalar_lea.sflag [#allocation3], 1
    %2003 = vsyncpa %s2002, 1

</llo_original>
